<compile_context>
chip_gen: v7x
topology: tpu7x:2x2x1
jax: 0.10.0
libtpu: 0.0.40
codegen_flags: <defaults>
</compile_context>

<pallas_src>
import functools

import jax
import jax.numpy as jnp
from jax.experimental import pallas as pl
from jax.experimental.pallas import tpu as pltpu

EPS = 1e-5  # nn.BatchNorm2d default eps
# TODO(synk): re-derive the scoped-VMEM limit / tile sizes per generation
# (v5e default scoped 16 MiB, v6e 32/128 MiB, v7x 32/64 MiB physical).
_VMEM_LIMIT = 48 * 1024 * 1024


def _conv3x3_deep_k(hb, w_ref):
    """3x3 / stride-1 / pad-1 conv of an NHWC bf16 tile as 3 accumulating K=3C MXU matmuls.

    Only a 3C-wide bf16 im2col slab is ever materialized (vs 9C f32 before); bf16 MXU
    operands with f32 accumulation. Returns (B*H*W, C_out) float32.
    """
    B, H, W, C = hb.shape
    zcol = jnp.zeros((B, H, 1, C), hb.dtype)
    h_m = jnp.concatenate([zcol, hb[:, :, :W - 1, :]], axis=2)       # kw=0 tap: x[w-1]
    h_p = jnp.concatenate([hb[:, :, 1:, :], zcol], axis=2)           # kw=2 tap: x[w+1]
    # TODO(synk): if the bundle dump shows bf16 sublane repack on the W shift above, do the
    # shift with pltpu.roll on the sublane axis (+ edge mask) or in f32 and cast h3 after.
    h3 = jnp.concatenate([h_m, hb, h_p], axis=-1)                    # (B, H, W, 3C)
    zrow = jnp.zeros((B, 1, W, 3 * C), hb.dtype)
    h3p = jnp.concatenate([zrow, h3, zrow], axis=1)                  # (B, H+2, W, 3C)
    cout = w_ref.shape[-1]
    acc = jnp.zeros((B * H * W, cout), jnp.float32)
    for kh in range(3):                                              # static unroll
        lhs = h3p[:, kh:kh + H].reshape(B * H * W, 3 * C)
        acc += jnp.dot(lhs, w_ref[pl.ds(kh * 3 * C, 3 * C), :],
                       preferred_element_type=jnp.float32)
    return acc


def _partial_stats(acc):
    """Per-tile partial [sum, sum-of-squares] per channel in one traversal -> (1, 2C) f32."""
    return jnp.sum(jnp.concatenate([acc, acc * acc], axis=-1), axis=0, keepdims=True)


def _bn_scale_shift(stats, gamma, beta, n_inv):
    """Fold BatchNorm (training-mode batch stats, biased variance) into per-channel FMA."""
    c = gamma.shape[-1]
    mean = stats[:, :c] * n_inv
    var = stats[:, c:] * n_inv - mean * mean
    scale = gamma * jax.lax.rsqrt(var + EPS)
    shift = beta - mean * scale
    return scale, shift


# ---- pass 1: conv1 + partial BN1 stats --------------------------------------------------
def _conv1_kernel(x_ref, w1_ref, y1_ref, stats1_ref):
    B, H, W, C = x_ref.shape
    acc = _conv3x3_deep_k(x_ref[...].astype(jnp.bfloat16), w1_ref)   # (B*H*W, C) f32
    y1_ref[...] = acc.reshape(B, H, W, -1).astype(y1_ref.dtype)      # bf16 HBM intermediate

    # TODO(synk): for v7x megacore, keep per-core partial stats (core_parallel / core_map)
    # plus a shared finalize instead of the single "arbitrary" accumulator axis.
    @pl.when(pl.program_id(0) == 0)
    def _():
        stats1_ref[...] = jnp.zeros_like(stats1_ref)
    stats1_ref[...] += _partial_stats(acc)


# ---- pass 2: BN1 + ReLU (f32 FMA, fused bf16 cast) -> conv2 + partial BN2 stats ----------
def _conv2_kernel(y1_ref, stats1_ref, g1_ref, b1_ref, w2_ref, y2_ref, stats2_ref, *, n_inv):
    B, H, W, C = y1_ref.shape
    scale, shift = _bn_scale_shift(stats1_ref[...], g1_ref[...], b1_ref[...], n_inv)
    h = (y1_ref[...].astype(jnp.float32) * scale.reshape(1, 1, 1, C)
         + shift.reshape(1, 1, 1, C))
    hb = jnp.maximum(h, 0.0).astype(jnp.bfloat16)        # BN + ReLU + bf16 cast in one pass
    acc = _conv3x3_deep_k(hb, w2_ref)
    y2_ref[...] = acc.reshape(B, H, W, -1).astype(y2_ref.dtype)

    @pl.when(pl.program_id(0) == 0)
    def _():
        stats2_ref[...] = jnp.zeros_like(stats2_ref)
    stats2_ref[...] += _partial_stats(acc)


# ---- pass 3: BN2 + identity + ReLU (all f32 on the VPU) ----------------------------------
def _finalize_kernel(y2_ref, stats2_ref, g2_ref, b2_ref, x_ref, o_ref, *, n_inv):
    C = o_ref.shape[-1]
    scale, shift = _bn_scale_shift(stats2_ref[...], g2_ref[...], b2_ref[...], n_inv)
    out = (y2_ref[...].astype(jnp.float32) * scale.reshape(1, 1, 1, C)
           + shift.reshape(1, 1, 1, C) + x_ref[...])
    o_ref[...] = jnp.maximum(out, 0.0).astype(o_ref.dtype)


def _pick_block_n(n, h, w, target_rows=256):
    """Smallest batch tile giving >= target_rows im2col rows per MXU push (256-wide MXU on
    v6e/v7x), falling back to the whole batch.
    TODO(synk): also cap the tile by VMEM at real ResNet spatial sizes and add H-row tiling
    (with a 2-row halo between the two convs) when a single image no longer fits."""
    for cand in range(1, n + 1):
        if n % cand == 0 and cand * h * w >= target_rows:
            return cand
    return n


def attn_basic_block(x, params, *, block_n=None):
    """AttnBasicBlock forward. `x` is NHWC (keep activations NHWC across the whole model --
    no layout transposes here). params = (w1, g1, b1, w2, g2, b2) with w* in (9*Cin, Cout)
    bf16 im2col layout (HWIO.reshape(9*Cin, Cout)) and g*/b* of shape (1, C) f32."""
    N, H, W, C = x.shape
    w1, g1, b1, w2, g2, b2 = params
    if block_n is None:
        block_n = _pick_block_n(N, H, W)
    assert N % block_n == 0
    grid = (N // block_n,)
    n_inv = 1.0 / float(N * H * W)
    m = N * H * W
    conv_flops = 2 * m * (9 * C) * C

    def act_spec():
        return pl.BlockSpec((block_n, H, W, C), lambda i: (i, 0, 0, 0))

    def pinned(r, c):
        return pl.BlockSpec((r, c), lambda i: (0, 0))

    def cparams(sem):
        return pltpu.CompilerParams(dimension_semantics=sem,
                                    vmem_limit_bytes=_VMEM_LIMIT)

    # pass 1: conv1 + BN1 partial stats ("arbitrary": the stats output is an accumulator).
    y1, stats1 = pl.pallas_call(
        _conv1_kernel,
        grid=grid,
        in_specs=[act_spec(), pinned(9 * C, C)],
        out_specs=(act_spec(), pinned(1, 2 * C)),
        out_shape=(jax.ShapeDtypeStruct((N, H, W, C), jnp.bfloat16),
                   jax.ShapeDtypeStruct((1, 2 * C), jnp.float32)),
        compiler_params=cparams(("arbitrary",)),
        cost_estimate=pl.CostEstimate(
            flops=conv_flops, transcendentals=0,
            bytes_accessed=int(m * C * 4 + 9 * C * C * 2 + m * C * 2 + 2 * C * 4)),
    )(x, w1)

    # pass 2: BN1 finalize + ReLU -> conv2 + BN2 partial stats.
    y2, stats2 = pl.pallas_call(
        functools.partial(_conv2_kernel, n_inv=n_inv),
        grid=grid,
        in_specs=[act_spec(), pinned(1, 2 * C), pinned(1, C), pinned(1, C),
                  pinned(9 * C, C)],
        out_specs=(act_spec(), pinned(1, 2 * C)),
        out_shape=(jax.ShapeDtypeStruct((N, H, W, C), jnp.bfloat16),
                   jax.ShapeDtypeStruct((1, 2 * C), jnp.float32)),
        compiler_params=cparams(("arbitrary",)),
        cost_estimate=pl.CostEstimate(
            flops=conv_flops + 5 * m * C, transcendentals=C,
            bytes_accessed=int(m * C * 2 + 9 * C * C * 2 + m * C * 2 + 2 * C * 4)),
    )(y1, stats1, g1, b1, w2)

    # pass 3: BN2 finalize + identity + ReLU (no accumulator -> "parallel" for megacore).
    out = pl.pallas_call(
        functools.partial(_finalize_kernel, n_inv=n_inv),
        grid=grid,
        in_specs=[act_spec(), pinned(1, 2 * C), pinned(1, C), pinned(1, C), act_spec()],
        out_specs=act_spec(),
        out_shape=jax.ShapeDtypeStruct((N, H, W, C), x.dtype),
        compiler_params=cparams(("parallel",)),
        cost_estimate=pl.CostEstimate(
            flops=4 * m * C, transcendentals=C,
            bytes_accessed=int(m * C * 2 + 2 * m * C * 4)),
    )(y2, stats2, g2, b2, x)
    return out


def reference_nhwc(x, w1_hwio, g1, b1, w2_hwio, g2, b2):
    """Pure-JAX NHWC f32 reference matching the PyTorch training-mode forward."""
    def bn(h, g, b):
        mean = jnp.mean(h, axis=(0, 1, 2), keepdims=True)
        var = jnp.mean((h - mean) ** 2, axis=(0, 1, 2), keepdims=True)
        return ((h - mean) * jax.lax.rsqrt(var + EPS) * g.reshape(1, 1, 1, -1)
                + b.reshape(1, 1, 1, -1))

    def conv(h, w):
        return jax.lax.conv_general_dilated(
            h, w, (1, 1), 'SAME', dimension_numbers=('NHWC', 'HWIO', 'NHWC'))

    out = jax.nn.relu(bn(conv(x, w1_hwio), g1, b1))
    out = bn(conv(out, w2_hwio), g2, b2)
    return jax.nn.relu(out + x)


if __name__ == "__main__":
    # AttnBasicBlock(inplanes=128, planes=128, stride=1, downsample=None):
    # identity path requires inplanes == planes; C=128 fills the 128-lane axis.
    # N=8 -> batch tile of 4 images (256 im2col rows per MXU push), grid of 2 steps
    # so the two-pass BN accumulator path is actually exercised.
    N, H, W, C = 8, 8, 8, 128

    key = jax.random.PRNGKey(0)
    ks = jax.random.split(key, 7)
    x = jax.random.normal(ks[0], (N, H, W, C), jnp.float32)            # NHWC activations
    w1_hwio = 0.05 * jax.random.normal(ks[1], (3, 3, C, C), jnp.float32)
    w2_hwio = 0.05 * jax.random.normal(ks[2], (3, 3, C, C), jnp.float32)
    g1 = 1.0 + 0.1 * jax.random.normal(ks[3], (1, C), jnp.float32)
    b1 = 0.1 * jax.random.normal(ks[4], (1, C), jnp.float32)
    g2 = 1.0 + 0.1 * jax.random.normal(ks[5], (1, C), jnp.float32)
    b2 = 0.1 * jax.random.normal(ks[6], (1, C), jnp.float32)

    # kernel-layout weights: HWIO -> (9*I, O) (row order kh-major, kw, I), bf16 MXU operands.
    w1 = w1_hwio.reshape(9 * C, C).astype(jnp.bfloat16)
    w2 = w2_hwio.reshape(9 * C, C).astype(jnp.bfloat16)

    out = attn_basic_block(x, (w1, g1, b1, w2, g2, b2))
    out = jax.block_until_ready(out)

    ref = reference_nhwc(x, w1_hwio, g1, b1, w2_hwio, g2, b2)
    assert out.shape == (N, H, W, C)
    max_err = float(jnp.max(jnp.abs(out - ref)))
    # bf16 MXU operands + bf16 HBM intermediates (with f32 accumulation and f32 BN/residual
    # math) loosen the pure-f32 tolerance; expected max_err ~1-2e-2 at these shapes.
    assert jnp.allclose(out, ref, atol=6e-2, rtol=6e-2), f"max_err={max_err}"
    print("KERNEL_OK")
</pallas_src>

<mosaic_0001>
module attributes {stable_mosaic.version = 11 : i64} {
  func.func @_conv1_kernel(%arg0: i32, %arg1: memref<4x8x8x128xf32, #tpu.memory_space<vmem>>, %arg2: memref<1152x128xbf16, #tpu.memory_space<vmem>>, %arg3: memref<4x8x8x128xbf16, #tpu.memory_space<vmem>>, %arg4: memref<1x256xf32, #tpu.memory_space<vmem>>) attributes {dimension_semantics = [#tpu.dimension_semantics<arbitrary>], iteration_bounds = array<i64: 2>, scalar_prefetch = 0 : i64, scratch_operands = 0 : i64, tpu.core_type = #tpu.core_type<tc>, window_params = [{transform_indices = @transform_0, window_bounds = array<i64: 4, 8, 8, 128>}, {pipeline_mode = #tpu.pipeline_mode<synchronous>, transform_indices = @transform_1, window_bounds = array<i64: 1152, 128>}, {transform_indices = @transform_2, window_bounds = array<i64: 4, 8, 8, 128>}, {pipeline_mode = #tpu.pipeline_mode<synchronous>, transform_indices = @transform_3, window_bounds = array<i64: 1, 256>}]} {
    %c0 = arith.constant 0 : index
    %c0_0 = arith.constant 0 : index
    %c0_1 = arith.constant 0 : index
    %c0_2 = arith.constant 0 : index
    %0 = vector.load %arg1[%c0, %c0_0, %c0_1, %c0_2] : memref<4x8x8x128xf32, #tpu.memory_space<vmem>>, vector<4x8x8x128xf32>
    %1 = arith.truncf %0 : vector<4x8x8x128xf32> to vector<4x8x8x128xbf16>
    %cst = arith.constant 0.000000e+00 : bf16
    %2 = vector.broadcast %cst : bf16 to vector<4x8x1x128xbf16>
    %3 = vector.extract_strided_slice %1 {offsets = [0, 0, 0, 0], sizes = [4, 8, 7, 128], strides = [1, 1, 1, 1]} : vector<4x8x8x128xbf16> to vector<4x8x7x128xbf16>
    %4 = tpu.concatenate %2, %3 in 2 : vector<4x8x1x128xbf16>, vector<4x8x7x128xbf16> -> vector<4x8x8x128xbf16>
    %5 = vector.extract_strided_slice %1 {offsets = [0, 0, 1, 0], sizes = [4, 8, 7, 128], strides = [1, 1, 1, 1]} : vector<4x8x8x128xbf16> to vector<4x8x7x128xbf16>
    %6 = tpu.concatenate %5, %2 in 2 : vector<4x8x7x128xbf16>, vector<4x8x1x128xbf16> -> vector<4x8x8x128xbf16>
    %7 = tpu.concatenate %4, %1, %6 in 3 : vector<4x8x8x128xbf16>, vector<4x8x8x128xbf16>, vector<4x8x8x128xbf16> -> vector<4x8x8x384xbf16>
    %cst_3 = arith.constant 0.000000e+00 : bf16
    %8 = vector.broadcast %cst_3 : bf16 to vector<4x1x8x384xbf16>
    %9 = tpu.concatenate %8, %7, %8 in 1 : vector<4x1x8x384xbf16>, vector<4x8x8x384xbf16>, vector<4x1x8x384xbf16> -> vector<4x10x8x384xbf16>
    %cst_4 = arith.constant 0.000000e+00 : f32
    %10 = vector.broadcast %cst_4 : f32 to vector<256x128xf32>
    %11 = vector.extract_strided_slice %9 {offsets = [0, 0, 0, 0], sizes = [4, 8, 8, 384], strides = [1, 1, 1, 1]} : vector<4x10x8x384xbf16> to vector<4x8x8x384xbf16>
    %12 = vector.shape_cast %11 : vector<4x8x8x384xbf16> to vector<256x384xbf16>
    %c0_5 = arith.constant 0 : index
    %c0_6 = arith.constant 0 : index
    %13 = vector.load %arg2[%c0_5, %c0_6] : memref<1152x128xbf16, #tpu.memory_space<vmem>>, vector<384x128xbf16>
    %cst_7 = arith.constant dense<0.000000e+00> : vector<256x128xf32>
    %14 = tpu.matmul %12, %13, %cst_7 {dimension_numbers = #tpu.dot_dimension_numbers<[1], [0], [0], [1], [0, 0, 1, 1], [], []>} : vector<256x384xbf16>, vector<384x128xbf16>, vector<256x128xf32> -> vector<256x128xf32>
    %15 = arith.addf %10, %14 : vector<256x128xf32>
    %16 = vector.extract_strided_slice %9 {offsets = [0, 1, 0, 0], sizes = [4, 8, 8, 384], strides = [1, 1, 1, 1]} : vector<4x10x8x384xbf16> to vector<4x8x8x384xbf16>
    %17 = vector.shape_cast %16 : vector<4x8x8x384xbf16> to vector<256x384xbf16>
    %c384 = arith.constant 384 : index
    %c0_8 = arith.constant 0 : index
    %18 = vector.load %arg2[%c384, %c0_8] : memref<1152x128xbf16, #tpu.memory_space<vmem>>, vector<384x128xbf16>
    %cst_9 = arith.constant dense<0.000000e+00> : vector<256x128xf32>
    %19 = tpu.matmul %17, %18, %cst_9 {dimension_numbers = #tpu.dot_dimension_numbers<[1], [0], [0], [1], [0, 0, 1, 1], [], []>} : vector<256x384xbf16>, vector<384x128xbf16>, vector<256x128xf32> -> vector<256x128xf32>
    %20 = arith.addf %15, %19 : vector<256x128xf32>
    %21 = vector.extract_strided_slice %9 {offsets = [0, 2, 0, 0], sizes = [4, 8, 8, 384], strides = [1, 1, 1, 1]} : vector<4x10x8x384xbf16> to vector<4x8x8x384xbf16>
    %22 = vector.shape_cast %21 : vector<4x8x8x384xbf16> to vector<256x384xbf16>
    %c768 = arith.constant 768 : index
    %c0_10 = arith.constant 0 : index
    %23 = vector.load %arg2[%c768, %c0_10] : memref<1152x128xbf16, #tpu.memory_space<vmem>>, vector<384x128xbf16>
    %cst_11 = arith.constant dense<0.000000e+00> : vector<256x128xf32>
    %24 = tpu.matmul %22, %23, %cst_11 {dimension_numbers = #tpu.dot_dimension_numbers<[1], [0], [0], [1], [0, 0, 1, 1], [], []>} : vector<256x384xbf16>, vector<384x128xbf16>, vector<256x128xf32> -> vector<256x128xf32>
    %25 = arith.addf %20, %24 : vector<256x128xf32>
    %26 = vector.shape_cast %25 : vector<256x128xf32> to vector<4x8x8x128xf32>
    %27 = arith.truncf %26 : vector<4x8x8x128xf32> to vector<4x8x8x128xbf16>
    %c0_12 = arith.constant 0 : index
    %c0_13 = arith.constant 0 : index
    %c0_14 = arith.constant 0 : index
    %c0_15 = arith.constant 0 : index
    %28 = vector.load %arg3[%c0_12, %c0_13, %c0_14, %c0_15] : memref<4x8x8x128xbf16, #tpu.memory_space<vmem>>, vector<4x8x8x128xbf16>
    tpu.vector_store %arg3[%c0_12, %c0_13, %c0_14, %c0_15], %27 {strides = array<i32>} : memref<4x8x8x128xbf16, #tpu.memory_space<vmem>>, vector<4x8x8x128xbf16>,
    %c0_i32 = arith.constant 0 : i32
    %29 = arith.cmpi eq, %arg0, %c0_i32 : i32
    %30 = arith.extui %29 : i1 to i32
    %c0_i32_16 = arith.constant 0 : i32
    %31 = arith.cmpi ne, %30, %c0_i32_16 : i32
    scf.if %31 {
      %cst_22 = arith.constant 0.000000e+00 : f32
      %39 = vector.broadcast %cst_22 : f32 to vector<1x256xf32>
      %c0_23 = arith.constant 0 : index
      %c0_24 = arith.constant 0 : index
      %40 = vector.load %arg4[%c0_23, %c0_24] : memref<1x256xf32, #tpu.memory_space<vmem>>, vector<1x256xf32>
      tpu.vector_store %arg4[%c0_23, %c0_24], %39 {strides = array<i32>} : memref<1x256xf32, #tpu.memory_space<vmem>>, vector<1x256xf32>,
    } else {
    }
    %c0_17 = arith.constant 0 : index
    %c0_18 = arith.constant 0 : index
    %32 = vector.load %arg4[%c0_17, %c0_18] : memref<1x256xf32, #tpu.memory_space<vmem>>, vector<1x256xf32>
    %33 = arith.mulf %25, %25 : vector<256x128xf32>
    %34 = tpu.concatenate %25, %33 in 1 : vector<256x128xf32>, vector<256x128xf32> -> vector<256x256xf32>
    %cst_19 = arith.constant dense<0.000000e+00> : vector<256xf32>
    %35 = vector.multi_reduction <add>, %34, %cst_19 [0] : vector<256x256xf32> to vector<256xf32>
    %36 = vector.shape_cast %35 : vector<256xf32> to vector<1x256xf32>
    %37 = arith.addf %32, %36 : vector<1x256xf32>
    %c0_20 = arith.constant 0 : index
    %c0_21 = arith.constant 0 : index
    %38 = vector.load %arg4[%c0_20, %c0_21] : memref<1x256xf32, #tpu.memory_space<vmem>>, vector<1x256xf32>
    tpu.vector_store %arg4[%c0_20, %c0_21], %37 {strides = array<i32>} : memref<1x256xf32, #tpu.memory_space<vmem>>, vector<1x256xf32>,
    return
  }
  func.func @transform_0(%arg0: i32) -> (i32, i32, i32, i32) {
    %c0_i32 = arith.constant 0 : i32
    %c0_i32_0 = arith.constant 0 : i32
    %c0_i32_1 = arith.constant 0 : i32
    %c0_i32_2 = arith.constant 0 : i32
    return %arg0, %c0_i32, %c0_i32_0, %c0_i32_1 : i32, i32, i32, i32
  }
  func.func @transform_1(%arg0: i32) -> (i32, i32) {
    %c0_i32 = arith.constant 0 : i32
    %c0_i32_0 = arith.constant 0 : i32
    %c0_i32_1 = arith.constant 0 : i32
    return %c0_i32, %c0_i32_0 : i32, i32
  }
  func.func @transform_2(%arg0: i32) -> (i32, i32, i32, i32) {
    %c0_i32 = arith.constant 0 : i32
    %c0_i32_0 = arith.constant 0 : i32
    %c0_i32_1 = arith.constant 0 : i32
    %c0_i32_2 = arith.constant 0 : i32
    return %arg0, %c0_i32, %c0_i32_0, %c0_i32_1 : i32, i32, i32, i32
  }
  func.func @transform_3(%arg0: i32) -> (i32, i32) {
    %c0_i32 = arith.constant 0 : i32
    %c0_i32_0 = arith.constant 0 : i32
    %c0_i32_1 = arith.constant 0 : i32
    return %c0_i32, %c0_i32_0 : i32, i32
  }
}

</mosaic_0001>

<llo_original>
// kernel: tpu_custom_call.1
$region0: #{tpu_custom_call.1}
  #allocation0 [shape = 'u32[]', space=smem, size = 0x4, offset = 0x4, fixed_abs, tag = 'smem constant byte address 0x4 - core index']
  #allocation1 [shape = 'u32[144,128]{1,0:T(1,128)}', space=vmem, size = 0x12000, scoped, tag = 'internal scratch']
  %s0 = inlined_call_operand.hbm [shape: f32[8,8,8,128], index: 0, kind: input, shape index: {}]
  %s1 = inlined_call_operand.hbm [shape: bf16[1152,128], index: 1, kind: input, shape index: {}]
  %s2 = inlined_call_operand.hbm [shape: bf16[8,8,8,128], index: 2, kind: output, shape index: {0}]
  %s3 = inlined_call_operand.hbm [shape: f32[1,256], index: 3, kind: output, shape index: {1}]
  %4 = xla_tuple %s2, %s3
  %s5 = sld [smem:[#allocation0]]
  $region61: #{tpu_custom_call.1} parent=0
    _
  %s7 = ssub.s32 1, %s5
  %s8 = scalar_select 0, %s7, %s5
  $region1: #{tpu_custom_call.1} parent=0
    #allocation2 [shape = 'u8[262144]{0}', space=vmem, size = 0x40000, scoped, tag = 'input window, operand 0']
    #allocation3 [shape = 's32[2]{0}', space=sflag, size = 0x8, scoped, tag = 'scoped memory for tpu_custom_call.1']
    #allocation4 [shape = 's32[2]{0}', space=sflag, size = 0x8, scoped, tag = 'scoped memory for tpu_custom_call.1']
    #allocation5 [shape = 'u8[294912]{0}', space=vmem, size = 0x48000, scoped, tag = 'input window, operand 1, single buffered']
    #allocation6 [shape = 's32[1]{0}', space=sflag, size = 0x4, scoped, tag = 'scoped memory for tpu_custom_call.1']
    #allocation7 [shape = 'u8[131072]{0}', space=vmem, size = 0x20000, scoped, tag = 'output window, operand 0']
    #allocation8 [shape = 'u8[1024]{0}', space=vmem, size = 0x400, scoped, tag = 'output window, operand 1, single buffered']
    #allocation9 [shape = 's32[1]{0}', space=sflag, size = 0x4, scoped, tag = 'scoped memory for tpu_custom_call.1']
    %9 = vsyncpa [#allocation3], 0
    %s10 = scalar_lea.sflag [#allocation3], 1
    %11 = vsyncpa %s10, 0
    %12 = vsyncpa [#allocation6], 0
    %13 = vsyncpa [#allocation4], 0
    %s14 = scalar_lea.sflag [#allocation4], 1
    %15 = vsyncpa %s14, 0
    %16 = vsyncpa [#allocation9], 0
    loop: start=0, step=1, limit=4
    $region2: #{tpu_custom_call.1} parent=1 // loop_pre_header
      _
    $region3: #{tpu_custom_call.1} parent=1 // loop_header
      %s18 = sphi 0, %s22
      %p19 = scmp.ge.s32.totalorder %s18, 4
      %s28 = sphi 0, %s30
      %s31 = sphi 0, %s28
      %s32 = sphi 0, %s31
      %s48 = sphi 0, %s32
      %s52 = sphi 0, %s52
      %s54 = sphi 0, %s52
      %s55 = sphi 0, %s54
      %s69 = sphi 0, %s55
      %s75 = sphi 0, %s77
      %s78 = sphi 0, %s75
      %s79 = sphi 0, %s78
      %s95 = sphi 0, %s79
      %s99 = sphi 0, %s99
      %s101 = sphi 0, %s99
      %s102 = sphi 0, %s101
      %s116 = sphi 0, %s102
    $region4: #{tpu_custom_call.1} parent=1 // loop_header_branch
      %21 = sbr.rel (%p19) target = $region8
    $region5: #{tpu_custom_call.1} parent=1 // loop_body
      %s23 = ssub.s32 %s18, 1
      %s24 = ssub.s32 %s18, 2
      %s25 = sadd.s32 %s18, 1
      %s26 = ssub.s32 %s18, %s25
      %p27 = scmp.eq.s32.totalorder %s26, 0
      %s29 = sadd.s32 %s28, 1
      %s30 = scalar_select %p27, %s28, %s29
      %p33 = pneg %p27
      %p34 = scmp.eq.s32.totalorder %s18, 1
      %p35 = por %p33, %p34
      %p36 = scmp.ne.s32.totalorder %s28, %s31
      %p37 = scmp.eq.s32.totalorder %s18, 0
      %p38 = por %p36, %p37
      %p39 = scmp.ne.s32.totalorder %s28, %s31
      %p40 = scmp.eq.s32.totalorder %s23, 1
      %p41 = por %p39, %p40
      %p42 = scmp.ne.s32.totalorder %s31, %s32
      %p43 = scmp.eq.s32.totalorder %s23, 0
      %p44 = por %p42, %p43
      %p45 = scmp.ne.s32.totalorder %s31, %s32
      %p46 = scmp.eq.s32.totalorder %s24, 1
      %p47 = por %p45, %p46
      %p49 = scmp.ne.s32.totalorder %s32, %s48
      %p50 = scmp.eq.s32.totalorder %s24, 0
      %p51 = por %p49, %p50
      %s53 = sadd.s32 %s52, 1
      %p56 = scmp.eq.s32.totalorder %s18, 1
      %p57 = scmp.ne.s32.totalorder %s52, %s54
      %p58 = scmp.eq.s32.totalorder %s18, 0
      %p59 = por %p57, %p58
      %p60 = scmp.ne.s32.totalorder %s52, %s54
      %p61 = scmp.eq.s32.totalorder %s23, 1
      %p62 = por %p60, %p61
      %p63 = scmp.ne.s32.totalorder %s54, %s55
      %p64 = scmp.eq.s32.totalorder %s23, 0
      %p65 = por %p63, %p64
      %p66 = scmp.ne.s32.totalorder %s54, %s55
      %p67 = scmp.eq.s32.totalorder %s24, 1
      %p68 = por %p66, %p67
      %p70 = scmp.ne.s32.totalorder %s55, %s69
      %p71 = scmp.eq.s32.totalorder %s24, 0
      %p72 = por %p70, %p71
      %s73 = ssub.s32 %s18, %s25
      %p74 = scmp.eq.s32.totalorder %s73, 0
      %s76 = sadd.s32 %s75, 1
      %s77 = scalar_select %p74, %s75, %s76
      %p80 = pneg %p74
      %p81 = scmp.eq.s32.totalorder %s18, 1
      %p82 = por %p80, %p81
      %p83 = scmp.ne.s32.totalorder %s75, %s78
      %p84 = scmp.eq.s32.totalorder %s18, 0
      %p85 = por %p83, %p84
      %p86 = scmp.ne.s32.totalorder %s75, %s78
      %p87 = scmp.eq.s32.totalorder %s23, 1
      %p88 = por %p86, %p87
      %p89 = scmp.ne.s32.totalorder %s78, %s79
      %p90 = scmp.eq.s32.totalorder %s23, 0
      %p91 = por %p89, %p90
      %p92 = scmp.ne.s32.totalorder %s78, %s79
      %p93 = scmp.eq.s32.totalorder %s24, 1
      %p94 = por %p92, %p93
      %p96 = scmp.ne.s32.totalorder %s79, %s95
      %p97 = scmp.eq.s32.totalorder %s24, 0
      %p98 = por %p96, %p97
      %s100 = sadd.s32 %s99, 1
      %p103 = scmp.eq.s32.totalorder %s18, 1
      %p104 = scmp.ne.s32.totalorder %s99, %s101
      %p105 = scmp.eq.s32.totalorder %s18, 0
      %p106 = por %p104, %p105
      %p107 = scmp.ne.s32.totalorder %s99, %s101
      %p108 = scmp.eq.s32.totalorder %s23, 1
      %p109 = por %p107, %p108
      %p110 = scmp.ne.s32.totalorder %s101, %s102
      %p111 = scmp.eq.s32.totalorder %s23, 0
      %p112 = por %p110, %p111
      %p113 = scmp.ne.s32.totalorder %s101, %s102
      %p114 = scmp.eq.s32.totalorder %s24, 1
      %p115 = por %p113, %p114
      %p117 = scmp.ne.s32.totalorder %s102, %s116
      %p118 = scmp.eq.s32.totalorder %s24, 0
      %p119 = por %p117, %p118
      %p120 = scmp.le.s32.totalorder 1, %s18
      %p121 = scmp.lt.s32.totalorder %s18, 3
      %p122 = pnand %p120, %p121
      %p123 = pneg %p122
      // Predicated region
      $region9: #{tpu_custom_call.1} parent=5 // pred_check
        _
      $region10: #{tpu_custom_call.1} parent=5 // pred_check_branch
        %125 = sbr.rel (%p122) target = $region12
      $region11: #{tpu_custom_call.1} parent=5 // pred_region
        %s126 = ssub.s32 %s18, 1
        // Predicated region
        $region13: #{tpu_custom_call.1} parent=11 // pred_check
          %p127 = pneg %p65
        $region14: #{tpu_custom_call.1} parent=11 // pred_check_branch
          %129 = sbr.rel (%p127) target = $region16
        $region15: #{tpu_custom_call.1} parent=11 // pred_region
          %s131 = ssub.s32 9216, 9216
          %132 = vsyncadd [#allocation6], %s131
          %s133 = sshll.u32 [#allocation5], 4
          %s134 = int_to_ptr.vmem [resolvable:$true] %s133
          %139 = dma.hbm_to_vmem [thread:$0]  %s1, 9216, %s134, [#allocation6], 64, 64, 4
        $region16: #{tpu_custom_call.1} parent=11 // pred_fallthru
          _
      $region12: #{tpu_custom_call.1} parent=5 // pred_fallthru
        _
      %p140 = scmp.lt.s32.totalorder %s18, 2
      // Predicated region
      $region17: #{tpu_custom_call.1} parent=5 // pred_check
        %p141 = pneg %p140
      $region18: #{tpu_custom_call.1} parent=5 // pred_check_branch
        %143 = sbr.rel (%p141) target = $region20
      $region19: #{tpu_custom_call.1} parent=5 // pred_region
        // Predicated region
        $region21: #{tpu_custom_call.1} parent=19 // pred_check
          %p144 = pneg %p38
        $region22: #{tpu_custom_call.1} parent=19 // pred_check_branch
          %146 = sbr.rel (%p144) target = $region24
        $region23: #{tpu_custom_call.1} parent=19 // pred_region
          %s147 = sand.u32 %s28, 1
          %s148 = scalar_lea.sflag [#allocation3], %s147
          %s149 = sand.u32 %s28, 1
          %s150 = smul.addr %s149, 256
          %s151 = scalar_lea.vmem [#allocation2], %s150
          %s152 = smul.u32 4, %s18
          %s154 = ssub.s32 4096, 4096
          %155 = vsyncadd %s148, %s154
          %s156 = smul.addr %s152, 8
          %s157 = smul.addr %s156, 128
          %s158 = scalar_lea.hbm %s0, %s157
          %s159 = sshll.u32 %s151, 4
          %s160 = int_to_ptr.vmem [resolvable:$true] %s159
          %165 = dma.hbm_to_vmem [thread:$0]  %s158, 4096, %s160, %s148, 128, 128, 8
        $region24: #{tpu_custom_call.1} parent=19 // pred_fallthru
          _
      $region20: #{tpu_custom_call.1} parent=5 // pred_fallthru
        _
      %p166 = scmp.le.s32.totalorder 1, %s18
      %p167 = scmp.lt.s32.totalorder %s18, 3
      %p168 = pnand %p166, %p167
      %p169 = pneg %p168
      // Predicated region
      $region25: #{tpu_custom_call.1} parent=5 // pred_check
        _
      $region26: #{tpu_custom_call.1} parent=5 // pred_check_branch
        %171 = sbr.rel (%p168) target = $region28
      $region27: #{tpu_custom_call.1} parent=5 // pred_region
        %s172 = ssub.s32 %s18, 1
        %s173 = sand.u32 %s31, 1
        %s174 = scalar_lea.sflag [#allocation3], %s173
        %s175 = sand.u32 %s31, 1
        %s176 = smul.addr %s175, 256
        %s177 = scalar_lea.vmem [#allocation2], %s176
        // Predicated region
        $region29: #{tpu_custom_call.1} parent=27 // pred_check
          %p178 = pneg %p44
        $region30: #{tpu_custom_call.1} parent=27 // pred_check_branch
          %180 = sbr.rel (%p178) target = $region32
        $region31: #{tpu_custom_call.1} parent=27 // pred_region
          %181 = dma.done %s174, 4096
        $region32: #{tpu_custom_call.1} parent=27 // pred_fallthru
          _
        // Predicated region
        $region33: #{tpu_custom_call.1} parent=27 // pred_check
          %p182 = pneg %p65
        $region34: #{tpu_custom_call.1} parent=27 // pred_check_branch
          %184 = sbr.rel (%p182) target = $region36
        $region35: #{tpu_custom_call.1} parent=27 // pred_region
          %185 = dma.done [#allocation6], 9216
        $region36: #{tpu_custom_call.1} parent=27 // pred_fallthru
          _
        %s186 = sand.u32 %s31, 1
        %s187 = scalar_lea.sflag [#allocation3], %s186
        %s188 = sand.u32 %s31, 1
        %s189 = smul.addr %s188, 256
        %s190 = scalar_lea.vmem [#allocation2], %s189
        %p191 = pneg %p44
        %p192 = pneg %p41
        %p193 = pneg %p65
        %p194 = pneg %p62
        %p195 = pneg %p91
        %p196 = pneg %p88
        %s197 = sand.u32 %s78, 1
        %s198 = scalar_lea.sflag [#allocation4], %s197
        %s199 = sand.u32 %s78, 1
        %s200 = smul.addr %s199, 128
        %s201 = scalar_lea.vmem [#allocation7], %s200
        %p202 = pneg %p112
        %p203 = pneg %p109
        %s204 = smul.u32 4, %s23
        %s205 = smul.u32 4, %s23
        %v207 = vld [vmem:[%s177] sm:$0xff]
        %v208 = vld [vmem:[%s177 + $0x8] sm:$0xff]
        %v209 = vld [vmem:[%s177 + $0x10] sm:$0xff]
        %v210 = vld [vmem:[%s177 + $0x18] sm:$0xff]
        %v211 = vld [vmem:[%s177 + $0x20] sm:$0xff]
        %v212 = vld [vmem:[%s177 + $0x28] sm:$0xff]
        %v213 = vld [vmem:[%s177 + $0x30] sm:$0xff]
        %v214 = vld [vmem:[%s177 + $0x38] sm:$0xff]
        %v215 = vld [vmem:[%s177 + $0x40] sm:$0xff]
        %v216 = vld [vmem:[%s177 + $0x48] sm:$0xff]
        %v217 = vld [vmem:[%s177 + $0x50] sm:$0xff]
        %v218 = vld [vmem:[%s177 + $0x58] sm:$0xff]
        %v219 = vld [vmem:[%s177 + $0x60] sm:$0xff]
        %v220 = vld [vmem:[%s177 + $0x68] sm:$0xff]
        %v221 = vld [vmem:[%s177 + $0x70] sm:$0xff]
        %v222 = vld [vmem:[%s177 + $0x78] sm:$0xff]
        %v223 = vld [vmem:[%s177 + $0x80] sm:$0xff]
        %v224 = vld [vmem:[%s177 + $0x88] sm:$0xff]
        %v225 = vld [vmem:[%s177 + $0x90] sm:$0xff]
        %v226 = vld [vmem:[%s177 + $0x98] sm:$0xff]
        %v227 = vld [vmem:[%s177 + $0xa0] sm:$0xff]
        %v228 = vld [vmem:[%s177 + $0xa8] sm:$0xff]
        %v229 = vld [vmem:[%s177 + $0xb0] sm:$0xff]
        %v230 = vld [vmem:[%s177 + $0xb8] sm:$0xff]
        %v231 = vld [vmem:[%s177 + $0xc0] sm:$0xff]
        %v232 = vld [vmem:[%s177 + $0xc8] sm:$0xff]
        %v233 = vld [vmem:[%s177 + $0xd0] sm:$0xff]
        %v234 = vld [vmem:[%s177 + $0xd8] sm:$0xff]
        %v235 = vld [vmem:[%s177 + $0xe0] sm:$0xff]
        %v236 = vld [vmem:[%s177 + $0xe8] sm:$0xff]
        %v237 = vld [vmem:[%s177 + $0xf0] sm:$0xff]
        %v238 = vld [vmem:[%s177 + $0xf8] sm:$0xff]
        %v239 = vpack.c.bf16 %v207, %v207
        %v240 = vpack.c.bf16 %v208, %v208
        %v241 = vpack.c.bf16 %v209, %v209
        %v242 = vpack.c.bf16 %v210, %v210
        %v243 = vpack.c.bf16 %v211, %v211
        %v244 = vpack.c.bf16 %v212, %v212
        %v245 = vpack.c.bf16 %v213, %v213
        %v246 = vpack.c.bf16 %v214, %v214
        %v247 = vpack.c.bf16 %v215, %v215
        %v248 = vpack.c.bf16 %v216, %v216
        %v249 = vpack.c.bf16 %v217, %v217
        %v250 = vpack.c.bf16 %v218, %v218
        %v251 = vpack.c.bf16 %v219, %v219
        %v252 = vpack.c.bf16 %v220, %v220
        %v253 = vpack.c.bf16 %v221, %v221
        %v254 = vpack.c.bf16 %v222, %v222
        %v255 = vpack.c.bf16 %v223, %v223
        %v256 = vpack.c.bf16 %v224, %v224
        %v257 = vpack.c.bf16 %v225, %v225
        %v258 = vpack.c.bf16 %v226, %v226
        %v259 = vpack.c.bf16 %v227, %v227
        %v260 = vpack.c.bf16 %v228, %v228
        %v261 = vpack.c.bf16 %v229, %v229
        %v262 = vpack.c.bf16 %v230, %v230
        %v263 = vpack.c.bf16 %v231, %v231
        %v264 = vpack.c.bf16 %v232, %v232
        %v265 = vpack.c.bf16 %v233, %v233
        %v266 = vpack.c.bf16 %v234, %v234
        %v267 = vpack.c.bf16 %v235, %v235
        %v268 = vpack.c.bf16 %v236, %v236
        %v269 = vpack.c.bf16 %v237, %v237
        %v270 = vpack.c.bf16 %v238, %v238
        %v272 = vshrl.u32 %v239, 16
        %v274 = vrot.slane %v272, 7
        %v275 = vshll.u32 %v239, 16
        %v277 = vor.u32 %v274, %v275
        %v279 = vshrl.u32 %v240, 16
        %v281 = vrot.slane %v279, 7
        %v282 = vshll.u32 %v240, 16
        %v284 = vor.u32 %v281, %v282
        %v286 = vshrl.u32 %v241, 16
        %v288 = vrot.slane %v286, 7
        %v289 = vshll.u32 %v241, 16
        %v291 = vor.u32 %v288, %v289
        %v293 = vshrl.u32 %v242, 16
        %v295 = vrot.slane %v293, 7
        %v296 = vshll.u32 %v242, 16
        %v298 = vor.u32 %v295, %v296
        %v300 = vshrl.u32 %v243, 16
        %v302 = vrot.slane %v300, 7
        %v303 = vshll.u32 %v243, 16
        %v305 = vor.u32 %v302, %v303
        %v307 = vshrl.u32 %v244, 16
        %v309 = vrot.slane %v307, 7
        %v310 = vshll.u32 %v244, 16
        %v312 = vor.u32 %v309, %v310
        %v314 = vshrl.u32 %v245, 16
        %v316 = vrot.slane %v314, 7
        %v317 = vshll.u32 %v245, 16
        %v319 = vor.u32 %v316, %v317
        %v321 = vshrl.u32 %v246, 16
        %v323 = vrot.slane %v321, 7
        %v324 = vshll.u32 %v246, 16
        %v326 = vor.u32 %v323, %v324
        %v328 = vshrl.u32 %v247, 16
        %v330 = vrot.slane %v328, 7
        %v331 = vshll.u32 %v247, 16
        %v333 = vor.u32 %v330, %v331
        %v335 = vshrl.u32 %v248, 16
        %v337 = vrot.slane %v335, 7
        %v338 = vshll.u32 %v248, 16
        %v340 = vor.u32 %v337, %v338
        %v342 = vshrl.u32 %v249, 16
        %v344 = vrot.slane %v342, 7
        %v345 = vshll.u32 %v249, 16
        %v347 = vor.u32 %v344, %v345
        %v349 = vshrl.u32 %v250, 16
        %v351 = vrot.slane %v349, 7
        %v352 = vshll.u32 %v250, 16
        %v354 = vor.u32 %v351, %v352
        %v356 = vshrl.u32 %v251, 16
        %v358 = vrot.slane %v356, 7
        %v359 = vshll.u32 %v251, 16
        %v361 = vor.u32 %v358, %v359
        %v363 = vshrl.u32 %v252, 16
        %v365 = vrot.slane %v363, 7
        %v366 = vshll.u32 %v252, 16
        %v368 = vor.u32 %v365, %v366
        %v370 = vshrl.u32 %v253, 16
        %v372 = vrot.slane %v370, 7
        %v373 = vshll.u32 %v253, 16
        %v375 = vor.u32 %v372, %v373
        %v377 = vshrl.u32 %v254, 16
        %v379 = vrot.slane %v377, 7
        %v380 = vshll.u32 %v254, 16
        %v382 = vor.u32 %v379, %v380
        %v384 = vshrl.u32 %v255, 16
        %v386 = vrot.slane %v384, 7
        %v387 = vshll.u32 %v255, 16
        %v389 = vor.u32 %v386, %v387
        %v391 = vshrl.u32 %v256, 16
        %v393 = vrot.slane %v391, 7
        %v394 = vshll.u32 %v256, 16
        %v396 = vor.u32 %v393, %v394
        %v398 = vshrl.u32 %v257, 16
        %v400 = vrot.slane %v398, 7
        %v401 = vshll.u32 %v257, 16
        %v403 = vor.u32 %v400, %v401
        %v405 = vshrl.u32 %v258, 16
        %v407 = vrot.slane %v405, 7
        %v408 = vshll.u32 %v258, 16
        %v410 = vor.u32 %v407, %v408
        %v412 = vshrl.u32 %v259, 16
        %v414 = vrot.slane %v412, 7
        %v415 = vshll.u32 %v259, 16
        %v417 = vor.u32 %v414, %v415
        %v419 = vshrl.u32 %v260, 16
        %v421 = vrot.slane %v419, 7
        %v422 = vshll.u32 %v260, 16
        %v424 = vor.u32 %v421, %v422
        %v426 = vshrl.u32 %v261, 16
        %v428 = vrot.slane %v426, 7
        %v429 = vshll.u32 %v261, 16
        %v431 = vor.u32 %v428, %v429
        %v433 = vshrl.u32 %v262, 16
        %v435 = vrot.slane %v433, 7
        %v436 = vshll.u32 %v262, 16
        %v438 = vor.u32 %v435, %v436
        %v440 = vshrl.u32 %v263, 16
        %v442 = vrot.slane %v440, 7
        %v443 = vshll.u32 %v263, 16
        %v445 = vor.u32 %v442, %v443
        %v447 = vshrl.u32 %v264, 16
        %v449 = vrot.slane %v447, 7
        %v450 = vshll.u32 %v264, 16
        %v452 = vor.u32 %v449, %v450
        %v454 = vshrl.u32 %v265, 16
        %v456 = vrot.slane %v454, 7
        %v457 = vshll.u32 %v265, 16
        %v459 = vor.u32 %v456, %v457
        %v461 = vshrl.u32 %v266, 16
        %v463 = vrot.slane %v461, 7
        %v464 = vshll.u32 %v266, 16
        %v466 = vor.u32 %v463, %v464
        %v468 = vshrl.u32 %v267, 16
        %v470 = vrot.slane %v468, 7
        %v471 = vshll.u32 %v267, 16
        %v473 = vor.u32 %v470, %v471
        %v475 = vshrl.u32 %v268, 16
        %v477 = vrot.slane %v475, 7
        %v478 = vshll.u32 %v268, 16
        %v480 = vor.u32 %v477, %v478
        %v482 = vshrl.u32 %v269, 16
        %v484 = vrot.slane %v482, 7
        %v485 = vshll.u32 %v269, 16
        %v487 = vor.u32 %v484, %v485
        %v489 = vshrl.u32 %v270, 16
        %v491 = vrot.slane %v489, 7
        %v492 = vshll.u32 %v270, 16
        %v494 = vor.u32 %v491, %v492
        %vm527 = vcmask 1040384
        %vm528 = vsmask.f32 256
        %vm529 = vmand %vm527, %vm528
        %v530 = vsel %vm529, 0, %v277
        %v531 = vsel %vm529, 0, %v284
        %v532 = vsel %vm529, 0, %v291
        %v533 = vsel %vm529, 0, %v298
        %v534 = vsel %vm529, 0, %v305
        %v535 = vsel %vm529, 0, %v312
        %v536 = vsel %vm529, 0, %v319
        %v537 = vsel %vm529, 0, %v326
        %v538 = vsel %vm529, 0, %v333
        %v539 = vsel %vm529, 0, %v340
        %v540 = vsel %vm529, 0, %v347
        %v541 = vsel %vm529, 0, %v354
        %v542 = vsel %vm529, 0, %v361
        %v543 = vsel %vm529, 0, %v368
        %v544 = vsel %vm529, 0, %v375
        %v545 = vsel %vm529, 0, %v382
        %v546 = vsel %vm529, 0, %v389
        %v547 = vsel %vm529, 0, %v396
        %v548 = vsel %vm529, 0, %v403
        %v549 = vsel %vm529, 0, %v410
        %v550 = vsel %vm529, 0, %v417
        %v551 = vsel %vm529, 0, %v424
        %v552 = vsel %vm529, 0, %v431
        %v553 = vsel %vm529, 0, %v438
        %v554 = vsel %vm529, 0, %v445
        %v555 = vsel %vm529, 0, %v452
        %v556 = vsel %vm529, 0, %v459
        %v557 = vsel %vm529, 0, %v466
        %v558 = vsel %vm529, 0, %v473
        %v559 = vsel %vm529, 0, %v480
        %v560 = vsel %vm529, 0, %v487
        %v561 = vsel %vm529, 0, %v494
        %v562 = vrot.slane %v275, 1
        %v563 = vor.u32 %v272, %v562
        %v564 = vrot.slane %v282, 1
        %v565 = vor.u32 %v279, %v564
        %v566 = vrot.slane %v289, 1
        %v567 = vor.u32 %v286, %v566
        %v568 = vrot.slane %v296, 1
        %v569 = vor.u32 %v293, %v568
        %v570 = vrot.slane %v303, 1
        %v571 = vor.u32 %v300, %v570
        %v572 = vrot.slane %v310, 1
        %v573 = vor.u32 %v307, %v572
        %v574 = vrot.slane %v317, 1
        %v575 = vor.u32 %v314, %v574
        %v576 = vrot.slane %v324, 1
        %v577 = vor.u32 %v321, %v576
        %v578 = vrot.slane %v331, 1
        %v579 = vor.u32 %v328, %v578
        %v580 = vrot.slane %v338, 1
        %v581 = vor.u32 %v335, %v580
        %v582 = vrot.slane %v345, 1
        %v583 = vor.u32 %v342, %v582
        %v584 = vrot.slane %v352, 1
        %v585 = vor.u32 %v349, %v584
        %v586 = vrot.slane %v359, 1
        %v587 = vor.u32 %v356, %v586
        %v588 = vrot.slane %v366, 1
        %v589 = vor.u32 %v363, %v588
        %v590 = vrot.slane %v373, 1
        %v591 = vor.u32 %v370, %v590
        %v592 = vrot.slane %v380, 1
        %v593 = vor.u32 %v377, %v592
        %v594 = vrot.slane %v387, 1
        %v595 = vor.u32 %v384, %v594
        %v596 = vrot.slane %v394, 1
        %v597 = vor.u32 %v391, %v596
        %v598 = vrot.slane %v401, 1
        %v599 = vor.u32 %v398, %v598
        %v600 = vrot.slane %v408, 1
        %v601 = vor.u32 %v405, %v600
        %v602 = vrot.slane %v415, 1
        %v603 = vor.u32 %v412, %v602
        %v604 = vrot.slane %v422, 1
        %v605 = vor.u32 %v419, %v604
        %v606 = vrot.slane %v429, 1
        %v607 = vor.u32 %v426, %v606
        %v608 = vrot.slane %v436, 1
        %v609 = vor.u32 %v433, %v608
        %v610 = vrot.slane %v443, 1
        %v611 = vor.u32 %v440, %v610
        %v612 = vrot.slane %v450, 1
        %v613 = vor.u32 %v447, %v612
        %v614 = vrot.slane %v457, 1
        %v615 = vor.u32 %v454, %v614
        %v616 = vrot.slane %v464, 1
        %v617 = vor.u32 %v461, %v616
        %v618 = vrot.slane %v471, 1
        %v619 = vor.u32 %v468, %v618
        %v620 = vrot.slane %v478, 1
        %v621 = vor.u32 %v475, %v620
        %v622 = vrot.slane %v485, 1
        %v623 = vor.u32 %v482, %v622
        %v624 = vrot.slane %v492, 1
        %v625 = vor.u32 %v489, %v624
        %vm658 = vcmask 1043456
        %vm659 = vsmask.f32 3328
        %vm660 = vmand %vm658, %vm659
        %v661 = vsel %vm660, %v563, 0
        %v662 = vsel %vm660, %v565, 0
        %v663 = vsel %vm660, %v567, 0
        %v664 = vsel %vm660, %v569, 0
        %v665 = vsel %vm660, %v571, 0
        %v666 = vsel %vm660, %v573, 0
        %v667 = vsel %vm660, %v575, 0
        %v668 = vsel %vm660, %v577, 0
        %v669 = vsel %vm660, %v579, 0
        %v670 = vsel %vm660, %v581, 0
        %v671 = vsel %vm660, %v583, 0
        %v672 = vsel %vm660, %v585, 0
        %v673 = vsel %vm660, %v587, 0
        %v674 = vsel %vm660, %v589, 0
        %v675 = vsel %vm660, %v591, 0
        %v676 = vsel %vm660, %v593, 0
        %v677 = vsel %vm660, %v595, 0
        %v678 = vsel %vm660, %v597, 0
        %v679 = vsel %vm660, %v599, 0
        %v680 = vsel %vm660, %v601, 0
        %v681 = vsel %vm660, %v603, 0
        %v682 = vsel %vm660, %v605, 0
        %v683 = vsel %vm660, %v607, 0
        %v684 = vsel %vm660, %v609, 0
        %v685 = vsel %vm660, %v611, 0
        %v686 = vsel %vm660, %v613, 0
        %v687 = vsel %vm660, %v615, 0
        %v688 = vsel %vm660, %v617, 0
        %v689 = vsel %vm660, %v619, 0
        %v690 = vsel %vm660, %v621, 0
        %v691 = vsel %vm660, %v623, 0
        %v692 = vsel %vm660, %v625, 0
        %v778 = vunpack.c.l.b16 0
        %v779 = vunpack.c.l.b16 %v530
        %v780 = vunpack.c.l.b16 %v239
        %v781 = vunpack.c.l.b16 %v661
        %v782 = vunpack.c.l.b16 %v531
        %v783 = vunpack.c.l.b16 %v240
        %v784 = vunpack.c.l.b16 %v662
        %v785 = vunpack.c.l.b16 %v532
        %v786 = vunpack.c.l.b16 %v241
        %v787 = vunpack.c.l.b16 %v663
        %v788 = vunpack.c.l.b16 %v533
        %v789 = vunpack.c.l.b16 %v242
        %v790 = vunpack.c.l.b16 %v664
        %v791 = vunpack.c.l.b16 %v534
        %v792 = vunpack.c.l.b16 %v243
        %v793 = vunpack.c.l.b16 %v665
        %v794 = vunpack.c.l.b16 %v535
        %v795 = vunpack.c.l.b16 %v244
        %v796 = vunpack.c.l.b16 %v666
        %v797 = vunpack.c.l.b16 %v536
        %v798 = vunpack.c.l.b16 %v245
        %v799 = vunpack.c.l.b16 %v667
        %v800 = vunpack.c.l.b16 %v538
        %v801 = vunpack.c.l.b16 %v247
        %v802 = vunpack.c.l.b16 %v669
        %v803 = vunpack.c.l.b16 %v539
        %v804 = vunpack.c.l.b16 %v248
        %v805 = vunpack.c.l.b16 %v670
        %v806 = vunpack.c.l.b16 %v540
        %v807 = vunpack.c.l.b16 %v249
        %v808 = vunpack.c.l.b16 %v671
        %v809 = vunpack.c.l.b16 %v541
        %v810 = vunpack.c.l.b16 %v250
        %v811 = vunpack.c.l.b16 %v672
        %v812 = vunpack.c.l.b16 %v542
        %v813 = vunpack.c.l.b16 %v251
        %v814 = vunpack.c.l.b16 %v673
        %v815 = vunpack.c.l.b16 %v543
        %v816 = vunpack.c.l.b16 %v252
        %v817 = vunpack.c.l.b16 %v674
        %v818 = vunpack.c.l.b16 %v544
        %v819 = vunpack.c.l.b16 %v253
        %v820 = vunpack.c.l.b16 %v675
        %v821 = vunpack.c.l.b16 %v546
        %v822 = vunpack.c.l.b16 %v255
        %v823 = vunpack.c.l.b16 %v677
        %v824 = vunpack.c.l.b16 %v547
        %v825 = vunpack.c.l.b16 %v256
        %v826 = vunpack.c.l.b16 %v678
        %v827 = vunpack.c.l.b16 %v548
        %v828 = vunpack.c.l.b16 %v257
        %v829 = vunpack.c.l.b16 %v679
        %v830 = vunpack.c.l.b16 %v549
        %v831 = vunpack.c.l.b16 %v258
        %v832 = vunpack.c.l.b16 %v680
        %v833 = vunpack.c.l.b16 %v550
        %v834 = vunpack.c.l.b16 %v259
        %v835 = vunpack.c.l.b16 %v681
        %v836 = vunpack.c.l.b16 %v551
        %v837 = vunpack.c.l.b16 %v260
        %v838 = vunpack.c.l.b16 %v682
        %v839 = vunpack.c.l.b16 %v552
        %v840 = vunpack.c.l.b16 %v261
        %v841 = vunpack.c.l.b16 %v683
        %v842 = vunpack.c.l.b16 %v554
        %v843 = vunpack.c.l.b16 %v263
        %v844 = vunpack.c.l.b16 %v685
        %v845 = vunpack.c.l.b16 %v555
        %v846 = vunpack.c.l.b16 %v264
        %v847 = vunpack.c.l.b16 %v686
        %v848 = vunpack.c.l.b16 %v556
        %v849 = vunpack.c.l.b16 %v265
        %v850 = vunpack.c.l.b16 %v687
        %v851 = vunpack.c.l.b16 %v557
        %v852 = vunpack.c.l.b16 %v266
        %v853 = vunpack.c.l.b16 %v688
        %v854 = vunpack.c.l.b16 %v558
        %v855 = vunpack.c.l.b16 %v267
        %v856 = vunpack.c.l.b16 %v689
        %v857 = vunpack.c.l.b16 %v559
        %v858 = vunpack.c.l.b16 %v268
        %v859 = vunpack.c.l.b16 %v690
        %v860 = vunpack.c.l.b16 %v560
        %v861 = vunpack.c.l.b16 %v269
        %v862 = vunpack.c.l.b16 %v691
        %v863 = vld [vmem:[#allocation5] sm:$0xf]
        %v864 = vld [vmem:[#allocation5 + $0x4] sm:$0xf]
        %v865 = vld [vmem:[#allocation5 + $0x8] sm:$0xf]
        %v866 = vld [vmem:[#allocation5 + $0xc] sm:$0xf]
        %v867 = vld [vmem:[#allocation5 + $0x10] sm:$0xf]
        %v868 = vld [vmem:[#allocation5 + $0x14] sm:$0xf]
        %v869 = vld [vmem:[#allocation5 + $0x18] sm:$0xf]
        %v870 = vld [vmem:[#allocation5 + $0x1c] sm:$0xf]
        %v871 = vld [vmem:[#allocation5 + $0x20] sm:$0xf]
        %v872 = vld [vmem:[#allocation5 + $0x24] sm:$0xf]
        %v873 = vld [vmem:[#allocation5 + $0x28] sm:$0xf]
        %v874 = vld [vmem:[#allocation5 + $0x2c] sm:$0xf]
        %v875 = vld [vmem:[#allocation5 + $0x30] sm:$0xf]
        %v876 = vld [vmem:[#allocation5 + $0x34] sm:$0xf]
        %v877 = vld [vmem:[#allocation5 + $0x38] sm:$0xf]
        %v878 = vld [vmem:[#allocation5 + $0x3c] sm:$0xf]
        %v879 = vld [vmem:[#allocation5 + $0x40] sm:$0xf]
        %v880 = vld [vmem:[#allocation5 + $0x44] sm:$0xf]
        %v881 = vld [vmem:[#allocation5 + $0x48] sm:$0xf]
        %v882 = vld [vmem:[#allocation5 + $0x4c] sm:$0xf]
        %v883 = vld [vmem:[#allocation5 + $0x50] sm:$0xf]
        %v884 = vld [vmem:[#allocation5 + $0x54] sm:$0xf]
        %v885 = vld [vmem:[#allocation5 + $0x58] sm:$0xf]
        %v886 = vld [vmem:[#allocation5 + $0x5c] sm:$0xf]
        %v887 = vld [vmem:[#allocation5 + $0x60] sm:$0xf]
        %v888 = vld [vmem:[#allocation5 + $0x64] sm:$0xf]
        %v889 = vld [vmem:[#allocation5 + $0x68] sm:$0xf]
        %v890 = vld [vmem:[#allocation5 + $0x6c] sm:$0xf]
        %v891 = vld [vmem:[#allocation5 + $0x70] sm:$0xf]
        %v892 = vld [vmem:[#allocation5 + $0x74] sm:$0xf]
        %v893 = vld [vmem:[#allocation5 + $0x78] sm:$0xf]
        %v894 = vld [vmem:[#allocation5 + $0x7c] sm:$0xf]
        %v895 = vld [vmem:[#allocation5 + $0x80] sm:$0xf]
        %v896 = vld [vmem:[#allocation5 + $0x84] sm:$0xf]
        %v897 = vld [vmem:[#allocation5 + $0x88] sm:$0xf]
        %v898 = vld [vmem:[#allocation5 + $0x8c] sm:$0xf]
        %v899 = vld [vmem:[#allocation5 + $0x90] sm:$0xf]
        %v900 = vld [vmem:[#allocation5 + $0x94] sm:$0xf]
        %v901 = vld [vmem:[#allocation5 + $0x98] sm:$0xf]
        %v902 = vld [vmem:[#allocation5 + $0x9c] sm:$0xf]
        %v903 = vld [vmem:[#allocation5 + $0xa0] sm:$0xf]
        %v904 = vld [vmem:[#allocation5 + $0xa4] sm:$0xf]
        %v905 = vld [vmem:[#allocation5 + $0xa8] sm:$0xf]
        %v906 = vld [vmem:[#allocation5 + $0xac] sm:$0xf]
        %v907 = vld [vmem:[#allocation5 + $0xb0] sm:$0xf]
        %v908 = vld [vmem:[#allocation5 + $0xb4] sm:$0xf]
        %v909 = vld [vmem:[#allocation5 + $0xb8] sm:$0xf]
        %v910 = vld [vmem:[#allocation5 + $0xbc] sm:$0xf]
        %v923 = vunpack.c.l.b16 %v537
        %v924 = vunpack.c.l.b16 %v246
        %v925 = vunpack.c.l.b16 %v668
        %v926 = vunpack.c.l.b16 %v545
        %v927 = vunpack.c.l.b16 %v254
        %v928 = vunpack.c.l.b16 %v676
        %v929 = vunpack.c.l.b16 %v553
        %v930 = vunpack.c.l.b16 %v262
        %v931 = vunpack.c.l.b16 %v684
        %v932 = vunpack.c.l.b16 %v561
        %v933 = vunpack.c.l.b16 %v270
        %v934 = vunpack.c.l.b16 %v692
        %v935 = vld [vmem:[#allocation5 + $0xc0] sm:$0xf]
        %v936 = vld [vmem:[#allocation5 + $0xc4] sm:$0xf]
        %v937 = vld [vmem:[#allocation5 + $0xc8] sm:$0xf]
        %v938 = vld [vmem:[#allocation5 + $0xcc] sm:$0xf]
        %v939 = vld [vmem:[#allocation5 + $0xd0] sm:$0xf]
        %v940 = vld [vmem:[#allocation5 + $0xd4] sm:$0xf]
        %v941 = vld [vmem:[#allocation5 + $0xd8] sm:$0xf]
        %v942 = vld [vmem:[#allocation5 + $0xdc] sm:$0xf]
        %v943 = vld [vmem:[#allocation5 + $0xe0] sm:$0xf]
        %v944 = vld [vmem:[#allocation5 + $0xe4] sm:$0xf]
        %v945 = vld [vmem:[#allocation5 + $0xe8] sm:$0xf]
        %v946 = vld [vmem:[#allocation5 + $0xec] sm:$0xf]
        %v947 = vld [vmem:[#allocation5 + $0xf0] sm:$0xf]
        %v948 = vld [vmem:[#allocation5 + $0xf4] sm:$0xf]
        %v949 = vld [vmem:[#allocation5 + $0xf8] sm:$0xf]
        %v950 = vld [vmem:[#allocation5 + $0xfc] sm:$0xf]
        %v951 = vld [vmem:[#allocation5 + $0x100] sm:$0xf]
        %v952 = vld [vmem:[#allocation5 + $0x104] sm:$0xf]
        %v953 = vld [vmem:[#allocation5 + $0x108] sm:$0xf]
        %v954 = vld [vmem:[#allocation5 + $0x10c] sm:$0xf]
        %v955 = vld [vmem:[#allocation5 + $0x110] sm:$0xf]
        %v956 = vld [vmem:[#allocation5 + $0x114] sm:$0xf]
        %v957 = vld [vmem:[#allocation5 + $0x118] sm:$0xf]
        %v958 = vld [vmem:[#allocation5 + $0x11c] sm:$0xf]
        %v959 = vld [vmem:[#allocation5 + $0x120] sm:$0xf]
        %v960 = vld [vmem:[#allocation5 + $0x124] sm:$0xf]
        %v961 = vld [vmem:[#allocation5 + $0x128] sm:$0xf]
        %v962 = vld [vmem:[#allocation5 + $0x12c] sm:$0xf]
        %v963 = vld [vmem:[#allocation5 + $0x130] sm:$0xf]
        %v964 = vld [vmem:[#allocation5 + $0x134] sm:$0xf]
        %v965 = vld [vmem:[#allocation5 + $0x138] sm:$0xf]
        %v966 = vld [vmem:[#allocation5 + $0x13c] sm:$0xf]
        %v967 = vld [vmem:[#allocation5 + $0x140] sm:$0xf]
        %v968 = vld [vmem:[#allocation5 + $0x144] sm:$0xf]
        %v969 = vld [vmem:[#allocation5 + $0x148] sm:$0xf]
        %v970 = vld [vmem:[#allocation5 + $0x14c] sm:$0xf]
        %v971 = vld [vmem:[#allocation5 + $0x150] sm:$0xf]
        %v972 = vld [vmem:[#allocation5 + $0x154] sm:$0xf]
        %v973 = vld [vmem:[#allocation5 + $0x158] sm:$0xf]
        %v974 = vld [vmem:[#allocation5 + $0x15c] sm:$0xf]
        %v975 = vld [vmem:[#allocation5 + $0x160] sm:$0xf]
        %v976 = vld [vmem:[#allocation5 + $0x164] sm:$0xf]
        %v977 = vld [vmem:[#allocation5 + $0x168] sm:$0xf]
        %v978 = vld [vmem:[#allocation5 + $0x16c] sm:$0xf]
        %v979 = vld [vmem:[#allocation5 + $0x170] sm:$0xf]
        %v980 = vld [vmem:[#allocation5 + $0x174] sm:$0xf]
        %v981 = vld [vmem:[#allocation5 + $0x178] sm:$0xf]
        %v982 = vld [vmem:[#allocation5 + $0x17c] sm:$0xf]
        %v983 = vpack.c.b16 %v782, %v779
        %v984 = vpack.c.b16 %v783, %v780
        %v985 = vpack.c.b16 %v784, %v781
        %v986 = vpack.c.b16 %v788, %v785
        %v987 = vpack.c.b16 %v789, %v786
        %v988 = vpack.c.b16 %v790, %v787
        %v989 = vpack.c.b16 %v794, %v791
        %v990 = vpack.c.b16 %v795, %v792
        %v991 = vpack.c.b16 %v796, %v793
        %v992 = vpack.c.b16 %v923, %v797
        %v993 = vpack.c.b16 %v924, %v798
        %v994 = vpack.c.b16 %v925, %v799
        %v995 = vpack.c.b16 %v803, %v800
        %v996 = vpack.c.b16 %v804, %v801
        %v997 = vpack.c.b16 %v805, %v802
        %v998 = vpack.c.b16 %v809, %v806
        %v999 = vpack.c.b16 %v810, %v807
        %v1000 = vpack.c.b16 %v811, %v808
        %v1001 = vpack.c.b16 %v815, %v812
        %v1002 = vpack.c.b16 %v816, %v813
        %v1003 = vpack.c.b16 %v817, %v814
        %v1004 = vpack.c.b16 %v926, %v818
        %v1005 = vpack.c.b16 %v927, %v819
        %v1006 = vpack.c.b16 %v928, %v820
        %v1007 = vpack.c.b16 %v824, %v821
        %v1008 = vpack.c.b16 %v825, %v822
        %v1009 = vpack.c.b16 %v826, %v823
        %v1010 = vpack.c.b16 %v830, %v827
        %v1011 = vpack.c.b16 %v831, %v828
        %v1012 = vpack.c.b16 %v832, %v829
        %v1013 = vpack.c.b16 %v836, %v833
        %v1014 = vpack.c.b16 %v837, %v834
        %v1015 = vpack.c.b16 %v838, %v835
        %v1016 = vpack.c.b16 %v929, %v839
        %v1017 = vpack.c.b16 %v930, %v840
        %v1018 = vpack.c.b16 %v931, %v841
        %v1019 = vpack.c.b16 %v845, %v842
        %v1020 = vpack.c.b16 %v846, %v843
        %v1021 = vpack.c.b16 %v847, %v844
        %v1022 = vpack.c.b16 %v851, %v848
        %v1023 = vpack.c.b16 %v852, %v849
        %v1024 = vpack.c.b16 %v853, %v850
        %v1025 = vpack.c.b16 %v857, %v854
        %v1026 = vpack.c.b16 %v858, %v855
        %v1027 = vpack.c.b16 %v859, %v856
        %v1028 = vpack.c.b16 %v932, %v860
        %v1029 = vpack.c.b16 %v933, %v861
        %v1030 = vpack.c.b16 %v934, %v862
        %v1127 = vunpack.c.l.b16 %v935
        %v1128 = vunpack.c.l.b16 %v936
        %v1129 = vunpack.c.l.b16 %v937
        %v1130 = vunpack.c.l.b16 %v938
        %v1131 = vunpack.c.l.b16 %v939
        %v1132 = vunpack.c.l.b16 %v940
        %v1133 = vunpack.c.l.b16 %v941
        %v1134 = vunpack.c.l.b16 %v942
        %v1135 = vunpack.c.l.b16 %v943
        %v1136 = vunpack.c.l.b16 %v944
        %v1137 = vunpack.c.l.b16 %v945
        %v1138 = vunpack.c.l.b16 %v946
        %v1139 = vunpack.c.l.b16 %v947
        %v1140 = vunpack.c.l.b16 %v948
        %v1141 = vunpack.c.l.b16 %v949
        %v1142 = vunpack.c.l.b16 %v950
        %v1143 = vunpack.c.l.b16 %v951
        %v1144 = vunpack.c.l.b16 %v952
        %v1145 = vunpack.c.l.b16 %v953
        %v1146 = vunpack.c.l.b16 %v954
        %v1147 = vunpack.c.l.b16 %v955
        %v1148 = vunpack.c.l.b16 %v956
        %v1149 = vunpack.c.l.b16 %v957
        %v1150 = vunpack.c.l.b16 %v958
        %v1151 = vunpack.c.l.b16 %v959
        %v1152 = vunpack.c.l.b16 %v960
        %v1153 = vunpack.c.l.b16 %v961
        %v1154 = vunpack.c.l.b16 %v962
        %v1155 = vunpack.c.l.b16 %v963
        %v1156 = vunpack.c.l.b16 %v964
        %v1157 = vunpack.c.l.b16 %v965
        %v1158 = vunpack.c.l.b16 %v966
        %v1159 = vunpack.c.l.b16 %v967
        %v1160 = vunpack.c.l.b16 %v968
        %v1161 = vunpack.c.l.b16 %v969
        %v1162 = vunpack.c.l.b16 %v970
        %v1163 = vunpack.c.l.b16 %v971
        %v1164 = vunpack.c.l.b16 %v972
        %v1165 = vunpack.c.l.b16 %v973
        %v1166 = vunpack.c.l.b16 %v974
        %v1167 = vunpack.c.l.b16 %v975
        %v1168 = vunpack.c.l.b16 %v976
        %v1169 = vunpack.c.l.b16 %v977
        %v1170 = vunpack.c.l.b16 %v978
        %v1171 = vunpack.c.l.b16 %v979
        %v1172 = vunpack.c.l.b16 %v980
        %v1173 = vunpack.c.l.b16 %v981
        %v1174 = vunpack.c.l.b16 %v982
        %v1175 = vpack.c.b16 %v1128, %v1127
        %v1176 = vpack.c.b16 %v1130, %v1129
        %v1177 = vpack.c.b16 %v1132, %v1131
        %v1178 = vpack.c.b16 %v1134, %v1133
        %v1179 = vpack.c.b16 %v1136, %v1135
        %v1180 = vpack.c.b16 %v1138, %v1137
        %v1181 = vpack.c.b16 %v1140, %v1139
        %v1182 = vpack.c.b16 %v1142, %v1141
        %v1183 = vpack.c.b16 %v1144, %v1143
        %v1184 = vpack.c.b16 %v1146, %v1145
        %v1185 = vpack.c.b16 %v1148, %v1147
        %v1186 = vpack.c.b16 %v1150, %v1149
        %v1187 = vpack.c.b16 %v1152, %v1151
        %v1188 = vpack.c.b16 %v1154, %v1153
        %v1189 = vpack.c.b16 %v1156, %v1155
        %v1190 = vpack.c.b16 %v1158, %v1157
        %v1191 = vpack.c.b16 %v1160, %v1159
        %v1192 = vpack.c.b16 %v1162, %v1161
        %v1193 = vpack.c.b16 %v1164, %v1163
        %v1194 = vpack.c.b16 %v1166, %v1165
        %v1195 = vpack.c.b16 %v1168, %v1167
        %v1196 = vpack.c.b16 %v1170, %v1169
        %v1197 = vpack.c.b16 %v1172, %v1171
        %v1198 = vpack.c.b16 %v1174, %v1173
        %1223 = vmatprep.subr.bf16.mxu0 0
        %1224 = vmatpush1.bf16.msra.mxu0 %v1175
        %1225 = vmatprep.subr.bf16.mxu0 0
        %1226 = vmatpush1.bf16.msra.mxu0 %v1176
        %1227 = vmatprep.subr.bf16.mxu0 0
        %1228 = vmatpush1.bf16.msra.mxu0 %v1177
        %1229 = vmatprep.subr.bf16.mxu0 0
        %1230 = vmatpush1.bf16.msra.mxu0 %v1178
        %1231 = vmatprep.subr.bf16.mxu0 0
        %1232 = vmatpush1.bf16.msra.mxu0 %v1179
        %1233 = vmatprep.subr.bf16.mxu0 0
        %1234 = vmatpush1.bf16.msra.mxu0 %v1180
        %1235 = vmatprep.subr.bf16.mxu0 0
        %1236 = vmatpush1.bf16.msra.mxu0 %v1181
        %1237 = vmatprep.subr.bf16.mxu0 0
        %1238 = vmatpush1.bf16.msra.mxu0 %v1182
        %1239 = vmatprep.subr.bf16.mxu0 0
        %1240 = vmatpush1.bf16.msra.mxu0 %v1183
        %1241 = vmatprep.subr.bf16.mxu0 0
        %1242 = vmatpush1.bf16.msra.mxu0 %v1184
        %1243 = vmatprep.subr.bf16.mxu0 0
        %1244 = vmatpush1.bf16.msra.mxu0 %v1185
        %1245 = vmatprep.subr.bf16.mxu0 0
        %1246 = vmatpush1.bf16.msra.mxu0 %v1186
        %1247 = vmatprep.subr.bf16.mxu0 0
        %1248 = vmatpush1.bf16.msra.mxu0 %v1187
        %1249 = vmatprep.subr.bf16.mxu0 0
        %1250 = vmatpush1.bf16.msra.mxu0 %v1188
        %1251 = vmatprep.subr.bf16.mxu0 0
        %1252 = vmatpush1.bf16.msra.mxu0 %v1189
        %1253 = vmatprep.subr.bf16.mxu0 0
        %1254 = vmatpush1.bf16.msra.mxu0 %v1190
        %1255 = vmatprep.mubr.bf16.mxu0 %v984
        %1256 = vmatmul.mubr.bf16.gmra.mrb[0].mxu0 %v983
        %v1257 = vpop.f32.mrb[0].mxu0
        %v1258 = vadd.f32 0.0, %v1257
        %v1259 = vpop.f32.mrb[0].mxu0
        %v1260 = vpop.f32.mrb[0].mxu0
        %v1261 = vadd.f32 0.0, %v1260
        %v1262 = vpop.f32.mrb[0].mxu0
        %1263 = vmatprep.mubr.bf16.mxu0 %v987
        %1264 = vmatmul.mubr.bf16.gmra.mrb[0].mxu0 %v986
        %v1265 = vpop.f32.mrb[0].mxu0
        %v1266 = vadd.f32 0.0, %v1265
        %v1267 = vpop.f32.mrb[0].mxu0
        %v1268 = vpop.f32.mrb[0].mxu0
        %v1269 = vadd.f32 0.0, %v1268
        %v1270 = vpop.f32.mrb[0].mxu0
        %1271 = vmatprep.mubr.bf16.mxu0 %v990
        %1272 = vmatmul.mubr.bf16.gmra.mrb[0].mxu0 %v989
        %v1273 = vpop.f32.mrb[0].mxu0
        %v1274 = vadd.f32 0.0, %v1273
        %v1275 = vpop.f32.mrb[0].mxu0
        %v1276 = vpop.f32.mrb[0].mxu0
        %v1277 = vadd.f32 0.0, %v1276
        %v1278 = vpop.f32.mrb[0].mxu0
        %1279 = vmatprep.mubr.bf16.mxu0 %v993
        %1280 = vmatmul.mubr.bf16.gmra.mrb[0].mxu0 %v992
        %v1281 = vpop.f32.mrb[0].mxu0
        %v1282 = vadd.f32 0.0, %v1281
        %v1283 = vpop.f32.mrb[0].mxu0
        %v1284 = vpop.f32.mrb[0].mxu0
        %v1285 = vadd.f32 0.0, %v1284
        %v1286 = vpop.f32.mrb[0].mxu0
        %1287 = vmatprep.mubr.bf16.mxu0 %v996
        %1288 = vmatmul.mubr.bf16.gmra.mrb[0].mxu0 %v995
        %v1289 = vpop.f32.mrb[0].mxu0
        %v1290 = vadd.f32 0.0, %v1289
        %v1291 = vpop.f32.mrb[0].mxu0
        %v1292 = vpop.f32.mrb[0].mxu0
        %v1293 = vadd.f32 0.0, %v1292
        %v1294 = vpop.f32.mrb[0].mxu0
        %1295 = vmatprep.mubr.bf16.mxu0 %v999
        %1296 = vmatmul.mubr.bf16.gmra.mrb[0].mxu0 %v998
        %v1297 = vpop.f32.mrb[0].mxu0
        %v1298 = vadd.f32 0.0, %v1297
        %v1299 = vpop.f32.mrb[0].mxu0
        %v1300 = vpop.f32.mrb[0].mxu0
        %v1301 = vadd.f32 0.0, %v1300
        %v1302 = vpop.f32.mrb[0].mxu0
        %1303 = vmatprep.mubr.bf16.mxu0 %v1002
        %1304 = vmatmul.mubr.bf16.gmra.mrb[0].mxu0 %v1001
        %v1305 = vpop.f32.mrb[0].mxu0
        %v1306 = vadd.f32 0.0, %v1305
        %v1307 = vpop.f32.mrb[0].mxu0
        %v1308 = vpop.f32.mrb[0].mxu0
        %v1309 = vadd.f32 0.0, %v1308
        %v1310 = vpop.f32.mrb[0].mxu0
        %1311 = vmatprep.mubr.bf16.mxu0 %v1005
        %1312 = vmatmul.mubr.bf16.gmra.mrb[0].mxu0 %v1004
        %v1313 = vpop.f32.mrb[0].mxu0
        %v1314 = vadd.f32 0.0, %v1313
        %v1315 = vpop.f32.mrb[0].mxu0
        %v1316 = vpop.f32.mrb[0].mxu0
        %v1317 = vadd.f32 0.0, %v1316
        %v1318 = vpop.f32.mrb[0].mxu0
        %1319 = vmatprep.mubr.bf16.mxu0 %v1008
        %1320 = vmatmul.mubr.bf16.gmra.mrb[0].mxu0 %v1007
        %v1321 = vpop.f32.mrb[0].mxu0
        %v1322 = vadd.f32 0.0, %v1321
        %v1323 = vpop.f32.mrb[0].mxu0
        %v1324 = vpop.f32.mrb[0].mxu0
        %v1325 = vadd.f32 0.0, %v1324
        %v1326 = vpop.f32.mrb[0].mxu0
        %1327 = vmatprep.mubr.bf16.mxu0 %v1011
        %1328 = vmatmul.mubr.bf16.gmra.mrb[0].mxu0 %v1010
        %v1329 = vpop.f32.mrb[0].mxu0
        %v1330 = vadd.f32 0.0, %v1329
        %v1331 = vpop.f32.mrb[0].mxu0
        %v1332 = vpop.f32.mrb[0].mxu0
        %v1333 = vadd.f32 0.0, %v1332
        %v1334 = vpop.f32.mrb[0].mxu0
        %1335 = vmatprep.mubr.bf16.mxu0 %v1014
        %1336 = vmatmul.mubr.bf16.gmra.mrb[0].mxu0 %v1013
        %v1337 = vpop.f32.mrb[0].mxu0
        %v1338 = vadd.f32 0.0, %v1337
        %v1339 = vpop.f32.mrb[0].mxu0
        %v1340 = vpop.f32.mrb[0].mxu0
        %v1341 = vadd.f32 0.0, %v1340
        %v1342 = vpop.f32.mrb[0].mxu0
        %1343 = vmatprep.mubr.bf16.mxu0 %v1017
        %1344 = vmatmul.mubr.bf16.gmra.mrb[0].mxu0 %v1016
        %v1345 = vpop.f32.mrb[0].mxu0
        %v1346 = vadd.f32 0.0, %v1345
        %v1347 = vpop.f32.mrb[0].mxu0
        %v1348 = vpop.f32.mrb[0].mxu0
        %v1349 = vadd.f32 0.0, %v1348
        %v1350 = vpop.f32.mrb[0].mxu0
        %1351 = vmatprep.mubr.bf16.mxu0 %v1020
        %1352 = vmatmul.mubr.bf16.gmra.mrb[0].mxu0 %v1019
        %v1353 = vpop.f32.mrb[0].mxu0
        %v1354 = vadd.f32 0.0, %v1353
        %v1355 = vpop.f32.mrb[0].mxu0
        %v1356 = vpop.f32.mrb[0].mxu0
        %v1357 = vadd.f32 0.0, %v1356
        %v1358 = vpop.f32.mrb[0].mxu0
        %1359 = vmatprep.mubr.bf16.mxu0 %v1023
        %1360 = vmatmul.mubr.bf16.gmra.mrb[0].mxu0 %v1022
        %v1361 = vpop.f32.mrb[0].mxu0
        %v1362 = vadd.f32 0.0, %v1361
        %v1363 = vpop.f32.mrb[0].mxu0
        %v1364 = vpop.f32.mrb[0].mxu0
        %v1365 = vadd.f32 0.0, %v1364
        %v1366 = vpop.f32.mrb[0].mxu0
        %1367 = vmatprep.mubr.bf16.mxu0 %v1026
        %1368 = vmatmul.mubr.bf16.gmra.mrb[0].mxu0 %v1025
        %v1369 = vpop.f32.mrb[0].mxu0
        %v1370 = vadd.f32 0.0, %v1369
        %v1371 = vpop.f32.mrb[0].mxu0
        %v1372 = vpop.f32.mrb[0].mxu0
        %v1373 = vadd.f32 0.0, %v1372
        %v1374 = vpop.f32.mrb[0].mxu0
        %1375 = vmatprep.mubr.bf16.mxu0 %v1029
        %1376 = vmatmul.mubr.bf16.gmra.mrb[0].mxu0 %v1028
        %v1377 = vpop.f32.mrb[0].mxu0
        %v1378 = vadd.f32 0.0, %v1377
        %v1379 = vpop.f32.mrb[0].mxu0
        %v1380 = vpop.f32.mrb[0].mxu0
        %v1381 = vadd.f32 0.0, %v1380
        %v1382 = vpop.f32.mrb[0].mxu0
        %1383 = vdwg.mxu0
        %1384 = vmatprep.subr.bf16.mxu0 0
        %1385 = vmatpush1.bf16.msra.mxu0 %v1191
        %1386 = vmatprep.subr.bf16.mxu0 0
        %1387 = vmatpush1.bf16.msra.mxu0 %v1192
        %1388 = vmatprep.subr.bf16.mxu0 0
        %1389 = vmatpush1.bf16.msra.mxu0 %v1193
        %1390 = vmatprep.subr.bf16.mxu0 0
        %1391 = vmatpush1.bf16.msra.mxu0 %v1194
        %1392 = vmatprep.subr.bf16.mxu0 0
        %1393 = vmatpush1.bf16.msra.mxu0 %v1195
        %1394 = vmatprep.subr.bf16.mxu0 0
        %1395 = vmatpush1.bf16.msra.mxu0 %v1196
        %1396 = vmatprep.subr.bf16.mxu0 0
        %1397 = vmatpush1.bf16.msra.mxu0 %v1197
        %1398 = vmatprep.subr.bf16.mxu0 0
        %1399 = vmatpush1.bf16.msra.mxu0 %v1198
        %1400 = vmatprep.subr.bf16.mxu0 0
        %1401 = vmatpush1.bf16.msra.mxu0 0
        %1402 = vmatprep.subr.bf16.mxu0 0
        %1403 = vmatpush1.bf16.msra.mxu0 0
        %1404 = vmatprep.subr.bf16.mxu0 0
        %1405 = vmatpush1.bf16.msra.mxu0 0
        %1406 = vmatprep.subr.bf16.mxu0 0
        %1407 = vmatpush1.bf16.msra.mxu0 0
        %1408 = vmatprep.subr.bf16.mxu0 0
        %1409 = vmatpush1.bf16.msra.mxu0 0
        %1410 = vmatprep.subr.bf16.mxu0 0
        %1411 = vmatpush1.bf16.msra.mxu0 0
        %1412 = vmatprep.subr.bf16.mxu0 0
        %1413 = vmatpush1.bf16.msra.mxu0 0
        %1414 = vmatprep.subr.bf16.mxu0 0
        %1415 = vmatpush1.bf16.msra.mxu0 0
        %1416 = vmatprep.mubr.bf16.mxu0 0
        %1417 = vmatmul.mubr.bf16.gmra.mrb[0].mxu0 %v985
        %v1418 = vpop.f32.mrb[0].mxu0
        %v1419 = vadd.f32 %v1258, %v1418
        %v1420 = vpop.f32.mrb[0].mxu0
        %v1421 = vpop.f32.mrb[0].mxu0
        %v1422 = vadd.f32 %v1261, %v1421
        %v1423 = vpop.f32.mrb[0].mxu0
        %1424 = vmatprep.mubr.bf16.mxu0 0
        %1425 = vmatmul.mubr.bf16.gmra.mrb[0].mxu0 %v988
        %v1426 = vpop.f32.mrb[0].mxu0
        %v1427 = vadd.f32 %v1266, %v1426
        %v1428 = vpop.f32.mrb[0].mxu0
        %v1429 = vpop.f32.mrb[0].mxu0
        %v1430 = vadd.f32 %v1269, %v1429
        %v1431 = vpop.f32.mrb[0].mxu0
        %1432 = vmatprep.mubr.bf16.mxu0 0
        %1433 = vmatmul.mubr.bf16.gmra.mrb[0].mxu0 %v991
        %v1434 = vpop.f32.mrb[0].mxu0
        %v1435 = vadd.f32 %v1274, %v1434
        %v1436 = vpop.f32.mrb[0].mxu0
        %v1437 = vpop.f32.mrb[0].mxu0
        %v1438 = vadd.f32 %v1277, %v1437
        %v1439 = vpop.f32.mrb[0].mxu0
        %1440 = vmatprep.mubr.bf16.mxu0 0
        %1441 = vmatmul.mubr.bf16.gmra.mrb[0].mxu0 %v994
        %v1442 = vpop.f32.mrb[0].mxu0
        %v1443 = vadd.f32 %v1282, %v1442
        %v1444 = vpop.f32.mrb[0].mxu0
        %v1445 = vpop.f32.mrb[0].mxu0
        %v1446 = vadd.f32 %v1285, %v1445
        %v1447 = vpop.f32.mrb[0].mxu0
        %1448 = vmatprep.mubr.bf16.mxu0 0
        %1449 = vmatmul.mubr.bf16.gmra.mrb[0].mxu0 %v997
        %v1450 = vpop.f32.mrb[0].mxu0
        %v1451 = vadd.f32 %v1290, %v1450
        %v1452 = vpop.f32.mrb[0].mxu0
        %v1453 = vpop.f32.mrb[0].mxu0
        %v1454 = vadd.f32 %v1293, %v1453
        %v1455 = vpop.f32.mrb[0].mxu0
        %1456 = vmatprep.mubr.bf16.mxu0 0
        %1457 = vmatmul.mubr.bf16.gmra.mrb[0].mxu0 %v1000
        %v1458 = vpop.f32.mrb[0].mxu0
        %v1459 = vadd.f32 %v1298, %v1458
        %v1460 = vpop.f32.mrb[0].mxu0
        %v1461 = vpop.f32.mrb[0].mxu0
        %v1462 = vadd.f32 %v1301, %v1461
        %v1463 = vpop.f32.mrb[0].mxu0
        %1464 = vmatprep.mubr.bf16.mxu0 0
        %1465 = vmatmul.mubr.bf16.gmra.mrb[0].mxu0 %v1003
        %v1466 = vpop.f32.mrb[0].mxu0
        %v1467 = vadd.f32 %v1306, %v1466
        %v1468 = vpop.f32.mrb[0].mxu0
        %v1469 = vpop.f32.mrb[0].mxu0
        %v1470 = vadd.f32 %v1309, %v1469
        %v1471 = vpop.f32.mrb[0].mxu0
        %1472 = vmatprep.mubr.bf16.mxu0 0
        %1473 = vmatmul.mubr.bf16.gmra.mrb[0].mxu0 %v1006
        %v1474 = vpop.f32.mrb[0].mxu0
        %v1475 = vadd.f32 %v1314, %v1474
        %v1476 = vpop.f32.mrb[0].mxu0
        %v1477 = vpop.f32.mrb[0].mxu0
        %v1478 = vadd.f32 %v1317, %v1477
        %v1479 = vpop.f32.mrb[0].mxu0
        %1480 = vmatprep.mubr.bf16.mxu0 0
        %1481 = vmatmul.mubr.bf16.gmra.mrb[0].mxu0 %v1009
        %v1482 = vpop.f32.mrb[0].mxu0
        %v1483 = vadd.f32 %v1322, %v1482
        %v1484 = vpop.f32.mrb[0].mxu0
        %v1485 = vpop.f32.mrb[0].mxu0
        %v1486 = vadd.f32 %v1325, %v1485
        %v1487 = vpop.f32.mrb[0].mxu0
        %1488 = vmatprep.mubr.bf16.mxu0 0
        %1489 = vmatmul.mubr.bf16.gmra.mrb[0].mxu0 %v1012
        %v1490 = vpop.f32.mrb[0].mxu0
        %v1491 = vadd.f32 %v1330, %v1490
        %v1492 = vpop.f32.mrb[0].mxu0
        %v1493 = vpop.f32.mrb[0].mxu0
        %v1494 = vadd.f32 %v1333, %v1493
        %v1495 = vpop.f32.mrb[0].mxu0
        %1496 = vmatprep.mubr.bf16.mxu0 0
        %1497 = vmatmul.mubr.bf16.gmra.mrb[0].mxu0 %v1015
        %v1498 = vpop.f32.mrb[0].mxu0
        %v1499 = vadd.f32 %v1338, %v1498
        %v1500 = vpop.f32.mrb[0].mxu0
        %v1501 = vpop.f32.mrb[0].mxu0
        %v1502 = vadd.f32 %v1341, %v1501
        %v1503 = vpop.f32.mrb[0].mxu0
        %1504 = vmatprep.mubr.bf16.mxu0 0
        %1505 = vmatmul.mubr.bf16.gmra.mrb[0].mxu0 %v1018
        %v1506 = vpop.f32.mrb[0].mxu0
        %v1507 = vadd.f32 %v1346, %v1506
        %v1508 = vpop.f32.mrb[0].mxu0
        %v1509 = vpop.f32.mrb[0].mxu0
        %v1510 = vadd.f32 %v1349, %v1509
        %v1511 = vpop.f32.mrb[0].mxu0
        %1512 = vmatprep.mubr.bf16.mxu0 0
        %1513 = vmatmul.mubr.bf16.gmra.mrb[0].mxu0 %v1021
        %v1514 = vpop.f32.mrb[0].mxu0
        %v1515 = vadd.f32 %v1354, %v1514
        %v1516 = vpop.f32.mrb[0].mxu0
        %v1517 = vpop.f32.mrb[0].mxu0
        %v1518 = vadd.f32 %v1357, %v1517
        %v1519 = vpop.f32.mrb[0].mxu0
        %1520 = vmatprep.mubr.bf16.mxu0 0
        %1521 = vmatmul.mubr.bf16.gmra.mrb[0].mxu0 %v1024
        %v1522 = vpop.f32.mrb[0].mxu0
        %v1523 = vadd.f32 %v1362, %v1522
        %v1524 = vpop.f32.mrb[0].mxu0
        %v1525 = vpop.f32.mrb[0].mxu0
        %v1526 = vadd.f32 %v1365, %v1525
        %v1527 = vpop.f32.mrb[0].mxu0
        %1528 = vmatprep.mubr.bf16.mxu0 0
        %1529 = vmatmul.mubr.bf16.gmra.mrb[0].mxu0 %v1027
        %v1530 = vpop.f32.mrb[0].mxu0
        %v1531 = vadd.f32 %v1370, %v1530
        %v1532 = vpop.f32.mrb[0].mxu0
        %v1533 = vpop.f32.mrb[0].mxu0
        %v1534 = vadd.f32 %v1373, %v1533
        %v1535 = vpop.f32.mrb[0].mxu0
        %1536 = vmatprep.mubr.bf16.mxu0 0
        %1537 = vmatmul.mubr.bf16.gmra.mrb[0].mxu0 %v1030
        %v1538 = vpop.f32.mrb[0].mxu0
        %v1539 = vadd.f32 %v1378, %v1538
        %v1540 = vpop.f32.mrb[0].mxu0
        %v1541 = vpop.f32.mrb[0].mxu0
        %v1542 = vadd.f32 %v1381, %v1541
        %v1543 = vpop.f32.mrb[0].mxu0
        %1544 = vdwg.mxu0
        %v1545 = vpack.c.b16 %v779, %v778
        %v1546 = vpack.c.b16 %v780, %v778
        %v1547 = vpack.c.b16 %v781, %v778
        %v1548 = vpack.c.b16 %v785, %v782
        %v1549 = vpack.c.b16 %v786, %v783
        %v1550 = vpack.c.b16 %v787, %v784
        %v1551 = vpack.c.b16 %v791, %v788
        %v1552 = vpack.c.b16 %v792, %v789
        %v1553 = vpack.c.b16 %v793, %v790
        %v1554 = vpack.c.b16 %v797, %v794
        %v1555 = vpack.c.b16 %v798, %v795
        %v1556 = vpack.c.b16 %v799, %v796
        %v1557 = vpack.c.b16 %v800, %v778
        %v1558 = vpack.c.b16 %v801, %v778
        %v1559 = vpack.c.b16 %v802, %v778
        %v1560 = vpack.c.b16 %v806, %v803
        %v1561 = vpack.c.b16 %v807, %v804
        %v1562 = vpack.c.b16 %v808, %v805
        %v1563 = vpack.c.b16 %v812, %v809
        %v1564 = vpack.c.b16 %v813, %v810
        %v1565 = vpack.c.b16 %v814, %v811
        %v1566 = vpack.c.b16 %v818, %v815
        %v1567 = vpack.c.b16 %v819, %v816
        %v1568 = vpack.c.b16 %v820, %v817
        %v1569 = vpack.c.b16 %v821, %v778
        %v1570 = vpack.c.b16 %v822, %v778
        %v1571 = vpack.c.b16 %v823, %v778
        %v1572 = vpack.c.b16 %v827, %v824
        %v1573 = vpack.c.b16 %v828, %v825
        %v1574 = vpack.c.b16 %v829, %v826
        %v1575 = vpack.c.b16 %v833, %v830
        %v1576 = vpack.c.b16 %v834, %v831
        %v1577 = vpack.c.b16 %v835, %v832
        %v1578 = vpack.c.b16 %v839, %v836
        %v1579 = vpack.c.b16 %v840, %v837
        %v1580 = vpack.c.b16 %v841, %v838
        %v1581 = vpack.c.b16 %v842, %v778
        %v1582 = vpack.c.b16 %v843, %v778
        %v1583 = vpack.c.b16 %v844, %v778
        %v1584 = vpack.c.b16 %v848, %v845
        %v1585 = vpack.c.b16 %v849, %v846
        %v1586 = vpack.c.b16 %v850, %v847
        %v1587 = vpack.c.b16 %v854, %v851
        %v1588 = vpack.c.b16 %v855, %v852
        %v1589 = vpack.c.b16 %v856, %v853
        %v1590 = vpack.c.b16 %v860, %v857
        %v1591 = vpack.c.b16 %v861, %v858
        %v1592 = vpack.c.b16 %v862, %v859
        %v1689 = vunpack.c.l.b16 %v863
        %v1690 = vunpack.c.l.b16 %v864
        %v1691 = vunpack.c.l.b16 %v865
        %v1692 = vunpack.c.l.b16 %v866
        %v1693 = vunpack.c.l.b16 %v867
        %v1694 = vunpack.c.l.b16 %v868
        %v1695 = vunpack.c.l.b16 %v869
        %v1696 = vunpack.c.l.b16 %v870
        %v1697 = vunpack.c.l.b16 %v871
        %v1698 = vunpack.c.l.b16 %v872
        %v1699 = vunpack.c.l.b16 %v873
        %v1700 = vunpack.c.l.b16 %v874
        %v1701 = vunpack.c.l.b16 %v875
        %v1702 = vunpack.c.l.b16 %v876
        %v1703 = vunpack.c.l.b16 %v877
        %v1704 = vunpack.c.l.b16 %v878
        %v1705 = vunpack.c.l.b16 %v879
        %v1706 = vunpack.c.l.b16 %v880
        %v1707 = vunpack.c.l.b16 %v881
        %v1708 = vunpack.c.l.b16 %v882
        %v1709 = vunpack.c.l.b16 %v883
        %v1710 = vunpack.c.l.b16 %v884
        %v1711 = vunpack.c.l.b16 %v885
        %v1712 = vunpack.c.l.b16 %v886
        %v1713 = vunpack.c.l.b16 %v887
        %v1714 = vunpack.c.l.b16 %v888
        %v1715 = vunpack.c.l.b16 %v889
        %v1716 = vunpack.c.l.b16 %v890
        %v1717 = vunpack.c.l.b16 %v891
        %v1718 = vunpack.c.l.b16 %v892
        %v1719 = vunpack.c.l.b16 %v893
        %v1720 = vunpack.c.l.b16 %v894
        %v1721 = vunpack.c.l.b16 %v895
        %v1722 = vunpack.c.l.b16 %v896
        %v1723 = vunpack.c.l.b16 %v897
        %v1724 = vunpack.c.l.b16 %v898
        %v1725 = vunpack.c.l.b16 %v899
        %v1726 = vunpack.c.l.b16 %v900
        %v1727 = vunpack.c.l.b16 %v901
        %v1728 = vunpack.c.l.b16 %v902
        %v1729 = vunpack.c.l.b16 %v903
        %v1730 = vunpack.c.l.b16 %v904
        %v1731 = vunpack.c.l.b16 %v905
        %v1732 = vunpack.c.l.b16 %v906
        %v1733 = vunpack.c.l.b16 %v907
        %v1734 = vunpack.c.l.b16 %v908
        %v1735 = vunpack.c.l.b16 %v909
        %v1736 = vunpack.c.l.b16 %v910
        %v1737 = vpack.c.b16 %v1690, %v1689
        %v1738 = vpack.c.b16 %v1692, %v1691
        %v1739 = vpack.c.b16 %v1694, %v1693
        %v1740 = vpack.c.b16 %v1696, %v1695
        %v1741 = vpack.c.b16 %v1698, %v1697
        %v1742 = vpack.c.b16 %v1700, %v1699
        %v1743 = vpack.c.b16 %v1702, %v1701
        %v1744 = vpack.c.b16 %v1704, %v1703
        %v1745 = vpack.c.b16 %v1706, %v1705
        %v1746 = vpack.c.b16 %v1708, %v1707
        %v1747 = vpack.c.b16 %v1710, %v1709
        %v1748 = vpack.c.b16 %v1712, %v1711
        %v1749 = vpack.c.b16 %v1714, %v1713
        %v1750 = vpack.c.b16 %v1716, %v1715
        %v1751 = vpack.c.b16 %v1718, %v1717
        %v1752 = vpack.c.b16 %v1720, %v1719
        %v1753 = vpack.c.b16 %v1722, %v1721
        %v1754 = vpack.c.b16 %v1724, %v1723
        %v1755 = vpack.c.b16 %v1726, %v1725
        %v1756 = vpack.c.b16 %v1728, %v1727
        %v1757 = vpack.c.b16 %v1730, %v1729
        %v1758 = vpack.c.b16 %v1732, %v1731
        %v1759 = vpack.c.b16 %v1734, %v1733
        %v1760 = vpack.c.b16 %v1736, %v1735
        %1785 = vmatprep.subr.bf16.mxu0 0
        %1786 = vmatpush1.bf16.msra.mxu0 %v1737
        %1787 = vmatprep.subr.bf16.mxu0 0
        %1788 = vmatpush1.bf16.msra.mxu0 %v1738
        %1789 = vmatprep.subr.bf16.mxu0 0
        %1790 = vmatpush1.bf16.msra.mxu0 %v1739
        %1791 = vmatprep.subr.bf16.mxu0 0
        %1792 = vmatpush1.bf16.msra.mxu0 %v1740
        %1793 = vmatprep.subr.bf16.mxu0 0
        %1794 = vmatpush1.bf16.msra.mxu0 %v1741
        %1795 = vmatprep.subr.bf16.mxu0 0
        %1796 = vmatpush1.bf16.msra.mxu0 %v1742
        %1797 = vmatprep.subr.bf16.mxu0 0
        %1798 = vmatpush1.bf16.msra.mxu0 %v1743
        %1799 = vmatprep.subr.bf16.mxu0 0
        %1800 = vmatpush1.bf16.msra.mxu0 %v1744
        %1801 = vmatprep.subr.bf16.mxu0 0
        %1802 = vmatpush1.bf16.msra.mxu0 %v1745
        %1803 = vmatprep.subr.bf16.mxu0 0
        %1804 = vmatpush1.bf16.msra.mxu0 %v1746
        %1805 = vmatprep.subr.bf16.mxu0 0
        %1806 = vmatpush1.bf16.msra.mxu0 %v1747
        %1807 = vmatprep.subr.bf16.mxu0 0
        %1808 = vmatpush1.bf16.msra.mxu0 %v1748
        %1809 = vmatprep.subr.bf16.mxu0 0
        %1810 = vmatpush1.bf16.msra.mxu0 %v1749
        %1811 = vmatprep.subr.bf16.mxu0 0
        %1812 = vmatpush1.bf16.msra.mxu0 %v1750
        %1813 = vmatprep.subr.bf16.mxu0 0
        %1814 = vmatpush1.bf16.msra.mxu0 %v1751
        %1815 = vmatprep.subr.bf16.mxu0 0
        %1816 = vmatpush1.bf16.msra.mxu0 %v1752
        %1817 = vmatprep.mubr.bf16.mxu0 %v1546
        %1818 = vmatmul.mubr.bf16.gmra.mrb[0].mxu0 %v1545
        %v1819 = vpop.f32.mrb[0].mxu0
        %v1820 = vadd.f32 %v1419, %v1819
        %v1821 = vpop.f32.mrb[0].mxu0
        %v1822 = vpop.f32.mrb[0].mxu0
        %v1823 = vadd.f32 %v1422, %v1822
        %v1824 = vpop.f32.mrb[0].mxu0
        %1825 = vmatprep.mubr.bf16.mxu0 %v1549
        %1826 = vmatmul.mubr.bf16.gmra.mrb[0].mxu0 %v1548
        %v1827 = vpop.f32.mrb[0].mxu0
        %v1828 = vadd.f32 %v1427, %v1827
        %v1829 = vpop.f32.mrb[0].mxu0
        %v1830 = vpop.f32.mrb[0].mxu0
        %v1831 = vadd.f32 %v1430, %v1830
        %v1832 = vpop.f32.mrb[0].mxu0
        %1833 = vmatprep.mubr.bf16.mxu0 %v1552
        %1834 = vmatmul.mubr.bf16.gmra.mrb[0].mxu0 %v1551
        %v1835 = vpop.f32.mrb[0].mxu0
        %v1836 = vadd.f32 %v1435, %v1835
        %v1837 = vpop.f32.mrb[0].mxu0
        %v1838 = vpop.f32.mrb[0].mxu0
        %v1839 = vadd.f32 %v1438, %v1838
        %v1840 = vpop.f32.mrb[0].mxu0
        %1841 = vmatprep.mubr.bf16.mxu0 %v1555
        %1842 = vmatmul.mubr.bf16.gmra.mrb[0].mxu0 %v1554
        %v1843 = vpop.f32.mrb[0].mxu0
        %v1844 = vadd.f32 %v1443, %v1843
        %v1845 = vpop.f32.mrb[0].mxu0
        %v1846 = vpop.f32.mrb[0].mxu0
        %v1847 = vadd.f32 %v1446, %v1846
        %v1848 = vpop.f32.mrb[0].mxu0
        %1849 = vmatprep.mubr.bf16.mxu0 %v1558
        %1850 = vmatmul.mubr.bf16.gmra.mrb[0].mxu0 %v1557
        %v1851 = vpop.f32.mrb[0].mxu0
        %v1852 = vadd.f32 %v1451, %v1851
        %v1853 = vpop.f32.mrb[0].mxu0
        %v1854 = vpop.f32.mrb[0].mxu0
        %v1855 = vadd.f32 %v1454, %v1854
        %v1856 = vpop.f32.mrb[0].mxu0
        %1857 = vmatprep.mubr.bf16.mxu0 %v1561
        %1858 = vmatmul.mubr.bf16.gmra.mrb[0].mxu0 %v1560
        %v1859 = vpop.f32.mrb[0].mxu0
        %v1860 = vadd.f32 %v1459, %v1859
        %v1861 = vpop.f32.mrb[0].mxu0
        %v1862 = vpop.f32.mrb[0].mxu0
        %v1863 = vadd.f32 %v1462, %v1862
        %v1864 = vpop.f32.mrb[0].mxu0
        %1865 = vmatprep.mubr.bf16.mxu0 %v1564
        %1866 = vmatmul.mubr.bf16.gmra.mrb[0].mxu0 %v1563
        %v1867 = vpop.f32.mrb[0].mxu0
        %v1868 = vadd.f32 %v1467, %v1867
        %v1869 = vpop.f32.mrb[0].mxu0
        %v1870 = vpop.f32.mrb[0].mxu0
        %v1871 = vadd.f32 %v1470, %v1870
        %v1872 = vpop.f32.mrb[0].mxu0
        %1873 = vmatprep.mubr.bf16.mxu0 %v1567
        %1874 = vmatmul.mubr.bf16.gmra.mrb[0].mxu0 %v1566
        %v1875 = vpop.f32.mrb[0].mxu0
        %v1876 = vadd.f32 %v1475, %v1875
        %v1877 = vpop.f32.mrb[0].mxu0
        %v1878 = vpop.f32.mrb[0].mxu0
        %v1879 = vadd.f32 %v1478, %v1878
        %v1880 = vpop.f32.mrb[0].mxu0
        %1881 = vmatprep.mubr.bf16.mxu0 %v1570
        %1882 = vmatmul.mubr.bf16.gmra.mrb[0].mxu0 %v1569
        %v1883 = vpop.f32.mrb[0].mxu0
        %v1884 = vadd.f32 %v1483, %v1883
        %v1885 = vpop.f32.mrb[0].mxu0
        %v1886 = vpop.f32.mrb[0].mxu0
        %v1887 = vadd.f32 %v1486, %v1886
        %v1888 = vpop.f32.mrb[0].mxu0
        %1889 = vmatprep.mubr.bf16.mxu0 %v1573
        %1890 = vmatmul.mubr.bf16.gmra.mrb[0].mxu0 %v1572
        %v1891 = vpop.f32.mrb[0].mxu0
        %v1892 = vadd.f32 %v1491, %v1891
        %v1893 = vpop.f32.mrb[0].mxu0
        %v1894 = vpop.f32.mrb[0].mxu0
        %v1895 = vadd.f32 %v1494, %v1894
        %v1896 = vpop.f32.mrb[0].mxu0
        %1897 = vmatprep.mubr.bf16.mxu0 %v1576
        %1898 = vmatmul.mubr.bf16.gmra.mrb[0].mxu0 %v1575
        %v1899 = vpop.f32.mrb[0].mxu0
        %v1900 = vadd.f32 %v1499, %v1899
        %v1901 = vpop.f32.mrb[0].mxu0
        %v1902 = vpop.f32.mrb[0].mxu0
        %v1903 = vadd.f32 %v1502, %v1902
        %v1904 = vpop.f32.mrb[0].mxu0
        %1905 = vmatprep.mubr.bf16.mxu0 %v1579
        %1906 = vmatmul.mubr.bf16.gmra.mrb[0].mxu0 %v1578
        %v1907 = vpop.f32.mrb[0].mxu0
        %v1908 = vadd.f32 %v1507, %v1907
        %v1909 = vpop.f32.mrb[0].mxu0
        %v1910 = vpop.f32.mrb[0].mxu0
        %v1911 = vadd.f32 %v1510, %v1910
        %v1912 = vpop.f32.mrb[0].mxu0
        %1913 = vmatprep.mubr.bf16.mxu0 %v1582
        %1914 = vmatmul.mubr.bf16.gmra.mrb[0].mxu0 %v1581
        %v1915 = vpop.f32.mrb[0].mxu0
        %v1916 = vadd.f32 %v1515, %v1915
        %v1917 = vpop.f32.mrb[0].mxu0
        %v1918 = vpop.f32.mrb[0].mxu0
        %v1919 = vadd.f32 %v1518, %v1918
        %v1920 = vpop.f32.mrb[0].mxu0
        %1921 = vmatprep.mubr.bf16.mxu0 %v1585
        %1922 = vmatmul.mubr.bf16.gmra.mrb[0].mxu0 %v1584
        %v1923 = vpop.f32.mrb[0].mxu0
        %v1924 = vadd.f32 %v1523, %v1923
        %v1925 = vpop.f32.mrb[0].mxu0
        %v1926 = vpop.f32.mrb[0].mxu0
        %v1927 = vadd.f32 %v1526, %v1926
        %v1928 = vpop.f32.mrb[0].mxu0
        %1929 = vmatprep.mubr.bf16.mxu0 %v1588
        %1930 = vmatmul.mubr.bf16.gmra.mrb[0].mxu0 %v1587
        %v1931 = vpop.f32.mrb[0].mxu0
        %v1932 = vadd.f32 %v1531, %v1931
        %v1933 = vpop.f32.mrb[0].mxu0
        %v1934 = vpop.f32.mrb[0].mxu0
        %v1935 = vadd.f32 %v1534, %v1934
        %v1936 = vpop.f32.mrb[0].mxu0
        %1937 = vmatprep.mubr.bf16.mxu0 %v1591
        %1938 = vmatmul.mubr.bf16.gmra.mrb[0].mxu0 %v1590
        %v1939 = vpop.f32.mrb[0].mxu0
        %v1940 = vadd.f32 %v1539, %v1939
        %v1941 = vpop.f32.mrb[0].mxu0
        %v1942 = vpop.f32.mrb[0].mxu0
        %v1943 = vadd.f32 %v1542, %v1942
        %v1944 = vpop.f32.mrb[0].mxu0
        %1945 = vdwg.mxu0
        %1946 = vmatprep.subr.bf16.mxu0 0
        %1947 = vmatpush1.bf16.msra.mxu0 %v1753
        %1948 = vmatprep.subr.bf16.mxu0 0
        %1949 = vmatpush1.bf16.msra.mxu0 %v1754
        %1950 = vmatprep.subr.bf16.mxu0 0
        %1951 = vmatpush1.bf16.msra.mxu0 %v1755
        %1952 = vmatprep.subr.bf16.mxu0 0
        %1953 = vmatpush1.bf16.msra.mxu0 %v1756
        %1954 = vmatprep.subr.bf16.mxu0 0
        %1955 = vmatpush1.bf16.msra.mxu0 %v1757
        %1956 = vmatprep.subr.bf16.mxu0 0
        %1957 = vmatpush1.bf16.msra.mxu0 %v1758
        %1958 = vmatprep.subr.bf16.mxu0 0
        %1959 = vmatpush1.bf16.msra.mxu0 %v1759
        %1960 = vmatprep.subr.bf16.mxu0 0
        %1961 = vmatpush1.bf16.msra.mxu0 %v1760
        %1962 = vmatprep.subr.bf16.mxu0 0
        %1963 = vmatpush1.bf16.msra.mxu0 0
        %1964 = vmatprep.subr.bf16.mxu0 0
        %1965 = vmatpush1.bf16.msra.mxu0 0
        %1966 = vmatprep.subr.bf16.mxu0 0
        %1967 = vmatpush1.bf16.msra.mxu0 0
        %1968 = vmatprep.subr.bf16.mxu0 0
        %1969 = vmatpush1.bf16.msra.mxu0 0
        %1970 = vmatprep.subr.bf16.mxu0 0
        %1971 = vmatpush1.bf16.msra.mxu0 0
        %1972 = vmatprep.subr.bf16.mxu0 0
        %1973 = vmatpush1.bf16.msra.mxu0 0
        %1974 = vmatprep.subr.bf16.mxu0 0
        %1975 = vmatpush1.bf16.msra.mxu0 0
        %1976 = vmatprep.subr.bf16.mxu0 0
        %1977 = vmatpush1.bf16.msra.mxu0 0
        %1978 = vmatprep.mubr.bf16.mxu0 0
        %1979 = vmatmul.mubr.bf16.gmra.mrb[0].mxu0 %v1547
        %v1980 = vpop.f32.mrb[0].mxu0
        %v1981 = vadd.f32 %v1820, %v1980
        %v1982 = vpop.f32.mrb[0].mxu0
        %v1983 = vpop.f32.mrb[0].mxu0
        %v1984 = vadd.f32 %v1823, %v1983
        %v1985 = vpop.f32.mrb[0].mxu0
        %1986 = vmatprep.mubr.bf16.mxu0 0
        %1987 = vmatmul.mubr.bf16.gmra.mrb[0].mxu0 %v1550
        %v1988 = vpop.f32.mrb[0].mxu0
        %v1989 = vadd.f32 %v1828, %v1988
        %v1990 = vpop.f32.mrb[0].mxu0
        %v1991 = vpop.f32.mrb[0].mxu0
        %v1992 = vadd.f32 %v1831, %v1991
        %v1993 = vpop.f32.mrb[0].mxu0
        %1994 = vmatprep.mubr.bf16.mxu0 0
        %1995 = vmatmul.mubr.bf16.gmra.mrb[0].mxu0 %v1553
        %v1996 = vpop.f32.mrb[0].mxu0
        %v1997 = vadd.f32 %v1836, %v1996
        %v1998 = vpop.f32.mrb[0].mxu0
        %v1999 = vpop.f32.mrb[0].mxu0
        %v2000 = vadd.f32 %v1839, %v1999
        %v2001 = vpop.f32.mrb[0].mxu0
        %2002 = vmatprep.mubr.bf16.mxu0 0
        %2003 = vmatmul.mubr.bf16.gmra.mrb[0].mxu0 %v1556
        %v2004 = vpop.f32.mrb[0].mxu0
        %v2005 = vadd.f32 %v1844, %v2004
        %v2006 = vpop.f32.mrb[0].mxu0
        %v2007 = vpop.f32.mrb[0].mxu0
        %v2008 = vadd.f32 %v1847, %v2007
        %v2009 = vpop.f32.mrb[0].mxu0
        %2010 = vmatprep.mubr.bf16.mxu0 0
        %2011 = vmatmul.mubr.bf16.gmra.mrb[0].mxu0 %v1559
        %v2012 = vpop.f32.mrb[0].mxu0
        %v2013 = vadd.f32 %v1852, %v2012
        %v2014 = vpop.f32.mrb[0].mxu0
        %v2015 = vpop.f32.mrb[0].mxu0
        %v2016 = vadd.f32 %v1855, %v2015
        %v2017 = vpop.f32.mrb[0].mxu0
        %2018 = vmatprep.mubr.bf16.mxu0 0
        %2019 = vmatmul.mubr.bf16.gmra.mrb[0].mxu0 %v1562
        %v2020 = vpop.f32.mrb[0].mxu0
        %v2021 = vadd.f32 %v1860, %v2020
        %v2022 = vpop.f32.mrb[0].mxu0
        %v2023 = vpop.f32.mrb[0].mxu0
        %v2024 = vadd.f32 %v1863, %v2023
        %v2025 = vpop.f32.mrb[0].mxu0
        %2026 = vmatprep.mubr.bf16.mxu0 0
        %2027 = vmatmul.mubr.bf16.gmra.mrb[0].mxu0 %v1565
        %v2028 = vpop.f32.mrb[0].mxu0
        %v2029 = vadd.f32 %v1868, %v2028
        %v2030 = vpop.f32.mrb[0].mxu0
        %v2031 = vpop.f32.mrb[0].mxu0
        %v2032 = vadd.f32 %v1871, %v2031
        %v2033 = vpop.f32.mrb[0].mxu0
        %2034 = vmatprep.mubr.bf16.mxu0 0
        %2035 = vmatmul.mubr.bf16.gmra.mrb[0].mxu0 %v1568
        %v2036 = vpop.f32.mrb[0].mxu0
        %v2037 = vadd.f32 %v1876, %v2036
        %v2038 = vpop.f32.mrb[0].mxu0
        %v2039 = vpop.f32.mrb[0].mxu0
        %v2040 = vadd.f32 %v1879, %v2039
        %v2041 = vpop.f32.mrb[0].mxu0
        %2042 = vmatprep.mubr.bf16.mxu0 0
        %2043 = vmatmul.mubr.bf16.gmra.mrb[0].mxu0 %v1571
        %v2044 = vpop.f32.mrb[0].mxu0
        %v2045 = vadd.f32 %v1884, %v2044
        %v2046 = vpop.f32.mrb[0].mxu0
        %v2047 = vpop.f32.mrb[0].mxu0
        %v2048 = vadd.f32 %v1887, %v2047
        %v2049 = vpop.f32.mrb[0].mxu0
        %2050 = vmatprep.mubr.bf16.mxu0 0
        %2051 = vmatmul.mubr.bf16.gmra.mrb[0].mxu0 %v1574
        %v2052 = vpop.f32.mrb[0].mxu0
        %v2053 = vadd.f32 %v1892, %v2052
        %v2054 = vpop.f32.mrb[0].mxu0
        %v2055 = vpop.f32.mrb[0].mxu0
        %v2056 = vadd.f32 %v1895, %v2055
        %v2057 = vpop.f32.mrb[0].mxu0
        %2058 = vmatprep.mubr.bf16.mxu0 0
        %2059 = vmatmul.mubr.bf16.gmra.mrb[0].mxu0 %v1577
        %v2060 = vpop.f32.mrb[0].mxu0
        %v2061 = vadd.f32 %v1900, %v2060
        %v2062 = vpop.f32.mrb[0].mxu0
        %v2063 = vpop.f32.mrb[0].mxu0
        %v2064 = vadd.f32 %v1903, %v2063
        %v2065 = vpop.f32.mrb[0].mxu0
        %2066 = vmatprep.mubr.bf16.mxu0 0
        %2067 = vmatmul.mubr.bf16.gmra.mrb[0].mxu0 %v1580
        %v2068 = vpop.f32.mrb[0].mxu0
        %v2069 = vadd.f32 %v1908, %v2068
        %v2070 = vpop.f32.mrb[0].mxu0
        %v2071 = vpop.f32.mrb[0].mxu0
        %v2072 = vadd.f32 %v1911, %v2071
        %v2073 = vpop.f32.mrb[0].mxu0
        %2074 = vmatprep.mubr.bf16.mxu0 0
        %2075 = vmatmul.mubr.bf16.gmra.mrb[0].mxu0 %v1583
        %v2076 = vpop.f32.mrb[0].mxu0
        %v2077 = vadd.f32 %v1916, %v2076
        %v2078 = vpop.f32.mrb[0].mxu0
        %v2079 = vpop.f32.mrb[0].mxu0
        %v2080 = vadd.f32 %v1919, %v2079
        %v2081 = vpop.f32.mrb[0].mxu0
        %2082 = vmatprep.mubr.bf16.mxu0 0
        %2083 = vmatmul.mubr.bf16.gmra.mrb[0].mxu0 %v1586
        %v2084 = vpop.f32.mrb[0].mxu0
        %v2085 = vadd.f32 %v1924, %v2084
        %v2086 = vpop.f32.mrb[0].mxu0
        %v2087 = vpop.f32.mrb[0].mxu0
        %v2088 = vadd.f32 %v1927, %v2087
        %v2089 = vpop.f32.mrb[0].mxu0
        %2090 = vmatprep.mubr.bf16.mxu0 0
        %2091 = vmatmul.mubr.bf16.gmra.mrb[0].mxu0 %v1589
        %v2092 = vpop.f32.mrb[0].mxu0
        %v2093 = vadd.f32 %v1932, %v2092
        %v2094 = vpop.f32.mrb[0].mxu0
        %v2095 = vpop.f32.mrb[0].mxu0
        %v2096 = vadd.f32 %v1935, %v2095
        %v2097 = vpop.f32.mrb[0].mxu0
        %2098 = vmatprep.mubr.bf16.mxu0 0
        %2099 = vmatmul.mubr.bf16.gmra.mrb[0].mxu0 %v1592
        %v2100 = vpop.f32.mrb[0].mxu0
        %v2101 = vadd.f32 %v1940, %v2100
        %v2102 = vpop.f32.mrb[0].mxu0
        %v2103 = vpop.f32.mrb[0].mxu0
        %v2104 = vadd.f32 %v1943, %v2103
        %v2105 = vpop.f32.mrb[0].mxu0
        %2106 = vdwg.mxu0
        %v2107 = vld [vmem:[#allocation5 + $0x180] sm:$0xf]
        %v2108 = vld [vmem:[#allocation5 + $0x184] sm:$0xf]
        %v2109 = vld [vmem:[#allocation5 + $0x188] sm:$0xf]
        %v2110 = vld [vmem:[#allocation5 + $0x18c] sm:$0xf]
        %v2111 = vld [vmem:[#allocation5 + $0x190] sm:$0xf]
        %v2112 = vld [vmem:[#allocation5 + $0x194] sm:$0xf]
        %v2113 = vld [vmem:[#allocation5 + $0x198] sm:$0xf]
        %v2114 = vld [vmem:[#allocation5 + $0x19c] sm:$0xf]
        %v2115 = vld [vmem:[#allocation5 + $0x1a0] sm:$0xf]
        %v2116 = vld [vmem:[#allocation5 + $0x1a4] sm:$0xf]
        %v2117 = vld [vmem:[#allocation5 + $0x1a8] sm:$0xf]
        %v2118 = vld [vmem:[#allocation5 + $0x1ac] sm:$0xf]
        %v2119 = vld [vmem:[#allocation5 + $0x1b0] sm:$0xf]
        %v2120 = vld [vmem:[#allocation5 + $0x1b4] sm:$0xf]
        %v2121 = vld [vmem:[#allocation5 + $0x1b8] sm:$0xf]
        %v2122 = vld [vmem:[#allocation5 + $0x1bc] sm:$0xf]
        %v2123 = vld [vmem:[#allocation5 + $0x1c0] sm:$0xf]
        %v2124 = vld [vmem:[#allocation5 + $0x1c4] sm:$0xf]
        %v2125 = vld [vmem:[#allocation5 + $0x1c8] sm:$0xf]
        %v2126 = vld [vmem:[#allocation5 + $0x1cc] sm:$0xf]
        %v2127 = vld [vmem:[#allocation5 + $0x1d0] sm:$0xf]
        %v2128 = vld [vmem:[#allocation5 + $0x1d4] sm:$0xf]
        %v2129 = vld [vmem:[#allocation5 + $0x1d8] sm:$0xf]
        %v2130 = vld [vmem:[#allocation5 + $0x1dc] sm:$0xf]
        %v2131 = vld [vmem:[#allocation5 + $0x1e0] sm:$0xf]
        %v2132 = vld [vmem:[#allocation5 + $0x1e4] sm:$0xf]
        %v2133 = vld [vmem:[#allocation5 + $0x1e8] sm:$0xf]
        %v2134 = vld [vmem:[#allocation5 + $0x1ec] sm:$0xf]
        %v2135 = vld [vmem:[#allocation5 + $0x1f0] sm:$0xf]
        %v2136 = vld [vmem:[#allocation5 + $0x1f4] sm:$0xf]
        %v2137 = vld [vmem:[#allocation5 + $0x1f8] sm:$0xf]
        %v2138 = vld [vmem:[#allocation5 + $0x1fc] sm:$0xf]
        %v2139 = vld [vmem:[#allocation5 + $0x200] sm:$0xf]
        %v2140 = vld [vmem:[#allocation5 + $0x204] sm:$0xf]
        %v2141 = vld [vmem:[#allocation5 + $0x208] sm:$0xf]
        %v2142 = vld [vmem:[#allocation5 + $0x20c] sm:$0xf]
        %v2143 = vld [vmem:[#allocation5 + $0x210] sm:$0xf]
        %v2144 = vld [vmem:[#allocation5 + $0x214] sm:$0xf]
        %v2145 = vld [vmem:[#allocation5 + $0x218] sm:$0xf]
        %v2146 = vld [vmem:[#allocation5 + $0x21c] sm:$0xf]
        %v2147 = vld [vmem:[#allocation5 + $0x220] sm:$0xf]
        %v2148 = vld [vmem:[#allocation5 + $0x224] sm:$0xf]
        %v2149 = vld [vmem:[#allocation5 + $0x228] sm:$0xf]
        %v2150 = vld [vmem:[#allocation5 + $0x22c] sm:$0xf]
        %v2151 = vld [vmem:[#allocation5 + $0x230] sm:$0xf]
        %v2152 = vld [vmem:[#allocation5 + $0x234] sm:$0xf]
        %v2153 = vld [vmem:[#allocation5 + $0x238] sm:$0xf]
        %v2154 = vld [vmem:[#allocation5 + $0x23c] sm:$0xf]
        %v2155 = vpack.c.b16 %v778, %v923
        %v2156 = vpack.c.b16 %v778, %v924
        %v2157 = vpack.c.b16 %v778, %v925
        %v2158 = vpack.c.b16 %v778, %v926
        %v2159 = vpack.c.b16 %v778, %v927
        %v2160 = vpack.c.b16 %v778, %v928
        %v2161 = vpack.c.b16 %v778, %v929
        %v2162 = vpack.c.b16 %v778, %v930
        %v2163 = vpack.c.b16 %v778, %v931
        %v2164 = vpack.c.b16 %v778, %v932
        %v2165 = vpack.c.b16 %v778, %v933
        %v2166 = vpack.c.b16 %v778, %v934
        %v2227 = vunpack.c.l.b16 %v2107
        %v2228 = vunpack.c.l.b16 %v2108
        %v2229 = vunpack.c.l.b16 %v2109
        %v2230 = vunpack.c.l.b16 %v2110
        %v2231 = vunpack.c.l.b16 %v2111
        %v2232 = vunpack.c.l.b16 %v2112
        %v2233 = vunpack.c.l.b16 %v2113
        %v2234 = vunpack.c.l.b16 %v2114
        %v2235 = vunpack.c.l.b16 %v2115
        %v2236 = vunpack.c.l.b16 %v2116
        %v2237 = vunpack.c.l.b16 %v2117
        %v2238 = vunpack.c.l.b16 %v2118
        %v2239 = vunpack.c.l.b16 %v2119
        %v2240 = vunpack.c.l.b16 %v2120
        %v2241 = vunpack.c.l.b16 %v2121
        %v2242 = vunpack.c.l.b16 %v2122
        %v2243 = vunpack.c.l.b16 %v2123
        %v2244 = vunpack.c.l.b16 %v2124
        %v2245 = vunpack.c.l.b16 %v2125
        %v2246 = vunpack.c.l.b16 %v2126
        %v2247 = vunpack.c.l.b16 %v2127
        %v2248 = vunpack.c.l.b16 %v2128
        %v2249 = vunpack.c.l.b16 %v2129
        %v2250 = vunpack.c.l.b16 %v2130
        %v2251 = vunpack.c.l.b16 %v2131
        %v2252 = vunpack.c.l.b16 %v2132
        %v2253 = vunpack.c.l.b16 %v2133
        %v2254 = vunpack.c.l.b16 %v2134
        %v2255 = vunpack.c.l.b16 %v2135
        %v2256 = vunpack.c.l.b16 %v2136
        %v2257 = vunpack.c.l.b16 %v2137
        %v2258 = vunpack.c.l.b16 %v2138
        %v2259 = vunpack.c.l.b16 %v2139
        %v2260 = vunpack.c.l.b16 %v2140
        %v2261 = vunpack.c.l.b16 %v2141
        %v2262 = vunpack.c.l.b16 %v2142
        %v2263 = vunpack.c.l.b16 %v2143
        %v2264 = vunpack.c.l.b16 %v2144
        %v2265 = vunpack.c.l.b16 %v2145
        %v2266 = vunpack.c.l.b16 %v2146
        %v2267 = vunpack.c.l.b16 %v2147
        %v2268 = vunpack.c.l.b16 %v2148
        %v2269 = vunpack.c.l.b16 %v2149
        %v2270 = vunpack.c.l.b16 %v2150
        %v2271 = vunpack.c.l.b16 %v2151
        %v2272 = vunpack.c.l.b16 %v2152
        %v2273 = vunpack.c.l.b16 %v2153
        %v2274 = vunpack.c.l.b16 %v2154
        %v2275 = vpack.c.b16 %v2228, %v2227
        %v2276 = vpack.c.b16 %v2230, %v2229
        %v2277 = vpack.c.b16 %v2232, %v2231
        %v2278 = vpack.c.b16 %v2234, %v2233
        %v2279 = vpack.c.b16 %v2236, %v2235
        %v2280 = vpack.c.b16 %v2238, %v2237
        %v2281 = vpack.c.b16 %v2240, %v2239
        %v2282 = vpack.c.b16 %v2242, %v2241
        %v2283 = vpack.c.b16 %v2244, %v2243
        %v2284 = vpack.c.b16 %v2246, %v2245
        %v2285 = vpack.c.b16 %v2248, %v2247
        %v2286 = vpack.c.b16 %v2250, %v2249
        %v2287 = vpack.c.b16 %v2252, %v2251
        %v2288 = vpack.c.b16 %v2254, %v2253
        %v2289 = vpack.c.b16 %v2256, %v2255
        %v2290 = vpack.c.b16 %v2258, %v2257
        %v2291 = vpack.c.b16 %v2260, %v2259
        %v2292 = vpack.c.b16 %v2262, %v2261
        %v2293 = vpack.c.b16 %v2264, %v2263
        %v2294 = vpack.c.b16 %v2266, %v2265
        %v2295 = vpack.c.b16 %v2268, %v2267
        %v2296 = vpack.c.b16 %v2270, %v2269
        %v2297 = vpack.c.b16 %v2272, %v2271
        %v2298 = vpack.c.b16 %v2274, %v2273
        %2323 = vmatprep.subr.bf16.mxu0 0
        %2324 = vmatpush1.bf16.msra.mxu0 %v2275
        %2325 = vmatprep.subr.bf16.mxu0 0
        %2326 = vmatpush1.bf16.msra.mxu0 %v2276
        %2327 = vmatprep.subr.bf16.mxu0 0
        %2328 = vmatpush1.bf16.msra.mxu0 %v2277
        %2329 = vmatprep.subr.bf16.mxu0 0
        %2330 = vmatpush1.bf16.msra.mxu0 %v2278
        %2331 = vmatprep.subr.bf16.mxu0 0
        %2332 = vmatpush1.bf16.msra.mxu0 %v2279
        %2333 = vmatprep.subr.bf16.mxu0 0
        %2334 = vmatpush1.bf16.msra.mxu0 %v2280
        %2335 = vmatprep.subr.bf16.mxu0 0
        %2336 = vmatpush1.bf16.msra.mxu0 %v2281
        %2337 = vmatprep.subr.bf16.mxu0 0
        %2338 = vmatpush1.bf16.msra.mxu0 %v2282
        %2339 = vmatprep.subr.bf16.mxu0 0
        %2340 = vmatpush1.bf16.msra.mxu0 %v2283
        %2341 = vmatprep.subr.bf16.mxu0 0
        %2342 = vmatpush1.bf16.msra.mxu0 %v2284
        %2343 = vmatprep.subr.bf16.mxu0 0
        %2344 = vmatpush1.bf16.msra.mxu0 %v2285
        %2345 = vmatprep.subr.bf16.mxu0 0
        %2346 = vmatpush1.bf16.msra.mxu0 %v2286
        %2347 = vmatprep.subr.bf16.mxu0 0
        %2348 = vmatpush1.bf16.msra.mxu0 %v2287
        %2349 = vmatprep.subr.bf16.mxu0 0
        %2350 = vmatpush1.bf16.msra.mxu0 %v2288
        %2351 = vmatprep.subr.bf16.mxu0 0
        %2352 = vmatpush1.bf16.msra.mxu0 %v2289
        %2353 = vmatprep.subr.bf16.mxu0 0
        %2354 = vmatpush1.bf16.msra.mxu0 %v2290
        %2355 = vmatprep.mubr.bf16.mxu0 %v1549
        %2356 = vmatmul.mubr.bf16.gmra.mrb[0].mxu0 %v1548
        %v2357 = vpop.f32.mrb[0].mxu0
        %v2358 = vadd.f32 0.0, %v2357
        %v2359 = vpop.f32.mrb[0].mxu0
        %v2360 = vpop.f32.mrb[0].mxu0
        %v2361 = vadd.f32 0.0, %v2360
        %v2362 = vpop.f32.mrb[0].mxu0
        %2363 = vmatprep.mubr.bf16.mxu0 %v1552
        %2364 = vmatmul.mubr.bf16.gmra.mrb[0].mxu0 %v1551
        %v2365 = vpop.f32.mrb[0].mxu0
        %v2366 = vadd.f32 0.0, %v2365
        %v2367 = vpop.f32.mrb[0].mxu0
        %v2368 = vpop.f32.mrb[0].mxu0
        %v2369 = vadd.f32 0.0, %v2368
        %v2370 = vpop.f32.mrb[0].mxu0
        %2371 = vmatprep.mubr.bf16.mxu0 %v1555
        %2372 = vmatmul.mubr.bf16.gmra.mrb[0].mxu0 %v1554
        %v2373 = vpop.f32.mrb[0].mxu0
        %v2374 = vadd.f32 0.0, %v2373
        %v2375 = vpop.f32.mrb[0].mxu0
        %v2376 = vpop.f32.mrb[0].mxu0
        %v2377 = vadd.f32 0.0, %v2376
        %v2378 = vpop.f32.mrb[0].mxu0
        %2379 = vmatprep.mubr.bf16.mxu0 %v2156
        %2380 = vmatmul.mubr.bf16.gmra.mrb[0].mxu0 %v2155
        %v2381 = vpop.f32.mrb[0].mxu0
        %v2382 = vadd.f32 0.0, %v2381
        %v2383 = vpop.f32.mrb[0].mxu0
        %v2384 = vpop.f32.mrb[0].mxu0
        %v2385 = vadd.f32 0.0, %v2384
        %v2386 = vpop.f32.mrb[0].mxu0
        %2387 = vmatprep.mubr.bf16.mxu0 %v1561
        %2388 = vmatmul.mubr.bf16.gmra.mrb[0].mxu0 %v1560
        %v2389 = vpop.f32.mrb[0].mxu0
        %v2390 = vadd.f32 0.0, %v2389
        %v2391 = vpop.f32.mrb[0].mxu0
        %v2392 = vpop.f32.mrb[0].mxu0
        %v2393 = vadd.f32 0.0, %v2392
        %v2394 = vpop.f32.mrb[0].mxu0
        %2395 = vmatprep.mubr.bf16.mxu0 %v1564
        %2396 = vmatmul.mubr.bf16.gmra.mrb[0].mxu0 %v1563
        %v2397 = vpop.f32.mrb[0].mxu0
        %v2398 = vadd.f32 0.0, %v2397
        %v2399 = vpop.f32.mrb[0].mxu0
        %v2400 = vpop.f32.mrb[0].mxu0
        %v2401 = vadd.f32 0.0, %v2400
        %v2402 = vpop.f32.mrb[0].mxu0
        %2403 = vmatprep.mubr.bf16.mxu0 %v1567
        %2404 = vmatmul.mubr.bf16.gmra.mrb[0].mxu0 %v1566
        %v2405 = vpop.f32.mrb[0].mxu0
        %v2406 = vadd.f32 0.0, %v2405
        %v2407 = vpop.f32.mrb[0].mxu0
        %v2408 = vpop.f32.mrb[0].mxu0
        %v2409 = vadd.f32 0.0, %v2408
        %v2410 = vpop.f32.mrb[0].mxu0
        %2411 = vmatprep.mubr.bf16.mxu0 %v2159
        %2412 = vmatmul.mubr.bf16.gmra.mrb[0].mxu0 %v2158
        %v2413 = vpop.f32.mrb[0].mxu0
        %v2414 = vadd.f32 0.0, %v2413
        %v2415 = vpop.f32.mrb[0].mxu0
        %v2416 = vpop.f32.mrb[0].mxu0
        %v2417 = vadd.f32 0.0, %v2416
        %v2418 = vpop.f32.mrb[0].mxu0
        %2419 = vmatprep.mubr.bf16.mxu0 %v1573
        %2420 = vmatmul.mubr.bf16.gmra.mrb[0].mxu0 %v1572
        %v2421 = vpop.f32.mrb[0].mxu0
        %v2422 = vadd.f32 0.0, %v2421
        %v2423 = vpop.f32.mrb[0].mxu0
        %v2424 = vpop.f32.mrb[0].mxu0
        %v2425 = vadd.f32 0.0, %v2424
        %v2426 = vpop.f32.mrb[0].mxu0
        %2427 = vmatprep.mubr.bf16.mxu0 %v1576
        %2428 = vmatmul.mubr.bf16.gmra.mrb[0].mxu0 %v1575
        %v2429 = vpop.f32.mrb[0].mxu0
        %v2430 = vadd.f32 0.0, %v2429
        %v2431 = vpop.f32.mrb[0].mxu0
        %v2432 = vpop.f32.mrb[0].mxu0
        %v2433 = vadd.f32 0.0, %v2432
        %v2434 = vpop.f32.mrb[0].mxu0
        %2435 = vmatprep.mubr.bf16.mxu0 %v1579
        %2436 = vmatmul.mubr.bf16.gmra.mrb[0].mxu0 %v1578
        %v2437 = vpop.f32.mrb[0].mxu0
        %v2438 = vadd.f32 0.0, %v2437
        %v2439 = vpop.f32.mrb[0].mxu0
        %v2440 = vpop.f32.mrb[0].mxu0
        %v2441 = vadd.f32 0.0, %v2440
        %v2442 = vpop.f32.mrb[0].mxu0
        %2443 = vmatprep.mubr.bf16.mxu0 %v2162
        %2444 = vmatmul.mubr.bf16.gmra.mrb[0].mxu0 %v2161
        %v2445 = vpop.f32.mrb[0].mxu0
        %v2446 = vadd.f32 0.0, %v2445
        %v2447 = vpop.f32.mrb[0].mxu0
        %v2448 = vpop.f32.mrb[0].mxu0
        %v2449 = vadd.f32 0.0, %v2448
        %v2450 = vpop.f32.mrb[0].mxu0
        %2451 = vmatprep.mubr.bf16.mxu0 %v1585
        %2452 = vmatmul.mubr.bf16.gmra.mrb[0].mxu0 %v1584
        %v2453 = vpop.f32.mrb[0].mxu0
        %v2454 = vadd.f32 0.0, %v2453
        %v2455 = vpop.f32.mrb[0].mxu0
        %v2456 = vpop.f32.mrb[0].mxu0
        %v2457 = vadd.f32 0.0, %v2456
        %v2458 = vpop.f32.mrb[0].mxu0
        %2459 = vmatprep.mubr.bf16.mxu0 %v1588
        %2460 = vmatmul.mubr.bf16.gmra.mrb[0].mxu0 %v1587
        %v2461 = vpop.f32.mrb[0].mxu0
        %v2462 = vadd.f32 0.0, %v2461
        %v2463 = vpop.f32.mrb[0].mxu0
        %v2464 = vpop.f32.mrb[0].mxu0
        %v2465 = vadd.f32 0.0, %v2464
        %v2466 = vpop.f32.mrb[0].mxu0
        %2467 = vmatprep.mubr.bf16.mxu0 %v1591
        %2468 = vmatmul.mubr.bf16.gmra.mrb[0].mxu0 %v1590
        %v2469 = vpop.f32.mrb[0].mxu0
        %v2470 = vadd.f32 0.0, %v2469
        %v2471 = vpop.f32.mrb[0].mxu0
        %v2472 = vpop.f32.mrb[0].mxu0
        %v2473 = vadd.f32 0.0, %v2472
        %v2474 = vpop.f32.mrb[0].mxu0
        %2475 = vmatprep.mubr.bf16.mxu0 %v2165
        %2476 = vmatmul.mubr.bf16.gmra.mrb[0].mxu0 %v2164
        %v2477 = vpop.f32.mrb[0].mxu0
        %v2478 = vadd.f32 0.0, %v2477
        %v2479 = vpop.f32.mrb[0].mxu0
        %v2480 = vpop.f32.mrb[0].mxu0
        %v2481 = vadd.f32 0.0, %v2480
        %v2482 = vpop.f32.mrb[0].mxu0
        %2483 = vdwg.mxu0
        %2484 = vmatprep.subr.bf16.mxu0 0
        %2485 = vmatpush1.bf16.msra.mxu0 %v2291
        %2486 = vmatprep.subr.bf16.mxu0 0
        %2487 = vmatpush1.bf16.msra.mxu0 %v2292
        %2488 = vmatprep.subr.bf16.mxu0 0
        %2489 = vmatpush1.bf16.msra.mxu0 %v2293
        %2490 = vmatprep.subr.bf16.mxu0 0
        %2491 = vmatpush1.bf16.msra.mxu0 %v2294
        %2492 = vmatprep.subr.bf16.mxu0 0
        %2493 = vmatpush1.bf16.msra.mxu0 %v2295
        %2494 = vmatprep.subr.bf16.mxu0 0
        %2495 = vmatpush1.bf16.msra.mxu0 %v2296
        %2496 = vmatprep.subr.bf16.mxu0 0
        %2497 = vmatpush1.bf16.msra.mxu0 %v2297
        %2498 = vmatprep.subr.bf16.mxu0 0
        %2499 = vmatpush1.bf16.msra.mxu0 %v2298
        %2500 = vmatprep.subr.bf16.mxu0 0
        %2501 = vmatpush1.bf16.msra.mxu0 0
        %2502 = vmatprep.subr.bf16.mxu0 0
        %2503 = vmatpush1.bf16.msra.mxu0 0
        %2504 = vmatprep.subr.bf16.mxu0 0
        %2505 = vmatpush1.bf16.msra.mxu0 0
        %2506 = vmatprep.subr.bf16.mxu0 0
        %2507 = vmatpush1.bf16.msra.mxu0 0
        %2508 = vmatprep.subr.bf16.mxu0 0
        %2509 = vmatpush1.bf16.msra.mxu0 0
        %2510 = vmatprep.subr.bf16.mxu0 0
        %2511 = vmatpush1.bf16.msra.mxu0 0
        %2512 = vmatprep.subr.bf16.mxu0 0
        %2513 = vmatpush1.bf16.msra.mxu0 0
        %2514 = vmatprep.subr.bf16.mxu0 0
        %2515 = vmatpush1.bf16.msra.mxu0 0
        %2516 = vmatprep.mubr.bf16.mxu0 0
        %2517 = vmatmul.mubr.bf16.gmra.mrb[0].mxu0 %v1550
        %v2518 = vpop.f32.mrb[0].mxu0
        %v2519 = vadd.f32 %v2358, %v2518
        %v2520 = vpop.f32.mrb[0].mxu0
        %v2521 = vpop.f32.mrb[0].mxu0
        %v2522 = vadd.f32 %v2361, %v2521
        %v2523 = vpop.f32.mrb[0].mxu0
        %2524 = vmatprep.mubr.bf16.mxu0 0
        %2525 = vmatmul.mubr.bf16.gmra.mrb[0].mxu0 %v1553
        %v2526 = vpop.f32.mrb[0].mxu0
        %v2527 = vadd.f32 %v2366, %v2526
        %v2528 = vpop.f32.mrb[0].mxu0
        %v2529 = vpop.f32.mrb[0].mxu0
        %v2530 = vadd.f32 %v2369, %v2529
        %v2531 = vpop.f32.mrb[0].mxu0
        %2532 = vmatprep.mubr.bf16.mxu0 0
        %2533 = vmatmul.mubr.bf16.gmra.mrb[0].mxu0 %v1556
        %v2534 = vpop.f32.mrb[0].mxu0
        %v2535 = vadd.f32 %v2374, %v2534
        %v2536 = vpop.f32.mrb[0].mxu0
        %v2537 = vpop.f32.mrb[0].mxu0
        %v2538 = vadd.f32 %v2377, %v2537
        %v2539 = vpop.f32.mrb[0].mxu0
        %2540 = vmatprep.mubr.bf16.mxu0 0
        %2541 = vmatmul.mubr.bf16.gmra.mrb[0].mxu0 %v2157
        %v2542 = vpop.f32.mrb[0].mxu0
        %v2543 = vadd.f32 %v2382, %v2542
        %v2544 = vpop.f32.mrb[0].mxu0
        %v2545 = vpop.f32.mrb[0].mxu0
        %v2546 = vadd.f32 %v2385, %v2545
        %v2547 = vpop.f32.mrb[0].mxu0
        %2548 = vmatprep.mubr.bf16.mxu0 0
        %2549 = vmatmul.mubr.bf16.gmra.mrb[0].mxu0 %v1562
        %v2550 = vpop.f32.mrb[0].mxu0
        %v2551 = vadd.f32 %v2390, %v2550
        %v2552 = vpop.f32.mrb[0].mxu0
        %v2553 = vpop.f32.mrb[0].mxu0
        %v2554 = vadd.f32 %v2393, %v2553
        %v2555 = vpop.f32.mrb[0].mxu0
        %2556 = vmatprep.mubr.bf16.mxu0 0
        %2557 = vmatmul.mubr.bf16.gmra.mrb[0].mxu0 %v1565
        %v2558 = vpop.f32.mrb[0].mxu0
        %v2559 = vadd.f32 %v2398, %v2558
        %v2560 = vpop.f32.mrb[0].mxu0
        %v2561 = vpop.f32.mrb[0].mxu0
        %v2562 = vadd.f32 %v2401, %v2561
        %v2563 = vpop.f32.mrb[0].mxu0
        %2564 = vmatprep.mubr.bf16.mxu0 0
        %2565 = vmatmul.mubr.bf16.gmra.mrb[0].mxu0 %v1568
        %v2566 = vpop.f32.mrb[0].mxu0
        %v2567 = vadd.f32 %v2406, %v2566
        %v2568 = vpop.f32.mrb[0].mxu0
        %v2569 = vpop.f32.mrb[0].mxu0
        %v2570 = vadd.f32 %v2409, %v2569
        %v2571 = vpop.f32.mrb[0].mxu0
        %2572 = vmatprep.mubr.bf16.mxu0 0
        %2573 = vmatmul.mubr.bf16.gmra.mrb[0].mxu0 %v2160
        %v2574 = vpop.f32.mrb[0].mxu0
        %v2575 = vadd.f32 %v2414, %v2574
        %v2576 = vpop.f32.mrb[0].mxu0
        %v2577 = vpop.f32.mrb[0].mxu0
        %v2578 = vadd.f32 %v2417, %v2577
        %v2579 = vpop.f32.mrb[0].mxu0
        %2580 = vmatprep.mubr.bf16.mxu0 0
        %2581 = vmatmul.mubr.bf16.gmra.mrb[0].mxu0 %v1574
        %v2582 = vpop.f32.mrb[0].mxu0
        %v2583 = vadd.f32 %v2422, %v2582
        %v2584 = vpop.f32.mrb[0].mxu0
        %v2585 = vpop.f32.mrb[0].mxu0
        %v2586 = vadd.f32 %v2425, %v2585
        %v2587 = vpop.f32.mrb[0].mxu0
        %2588 = vmatprep.mubr.bf16.mxu0 0
        %2589 = vmatmul.mubr.bf16.gmra.mrb[0].mxu0 %v1577
        %v2590 = vpop.f32.mrb[0].mxu0
        %v2591 = vadd.f32 %v2430, %v2590
        %v2592 = vpop.f32.mrb[0].mxu0
        %v2593 = vpop.f32.mrb[0].mxu0
        %v2594 = vadd.f32 %v2433, %v2593
        %v2595 = vpop.f32.mrb[0].mxu0
        %2596 = vmatprep.mubr.bf16.mxu0 0
        %2597 = vmatmul.mubr.bf16.gmra.mrb[0].mxu0 %v1580
        %v2598 = vpop.f32.mrb[0].mxu0
        %v2599 = vadd.f32 %v2438, %v2598
        %v2600 = vpop.f32.mrb[0].mxu0
        %v2601 = vpop.f32.mrb[0].mxu0
        %v2602 = vadd.f32 %v2441, %v2601
        %v2603 = vpop.f32.mrb[0].mxu0
        %2604 = vmatprep.mubr.bf16.mxu0 0
        %2605 = vmatmul.mubr.bf16.gmra.mrb[0].mxu0 %v2163
        %v2606 = vpop.f32.mrb[0].mxu0
        %v2607 = vadd.f32 %v2446, %v2606
        %v2608 = vpop.f32.mrb[0].mxu0
        %v2609 = vpop.f32.mrb[0].mxu0
        %v2610 = vadd.f32 %v2449, %v2609
        %v2611 = vpop.f32.mrb[0].mxu0
        %2612 = vmatprep.mubr.bf16.mxu0 0
        %2613 = vmatmul.mubr.bf16.gmra.mrb[0].mxu0 %v1586
        %v2614 = vpop.f32.mrb[0].mxu0
        %v2615 = vadd.f32 %v2454, %v2614
        %v2616 = vpop.f32.mrb[0].mxu0
        %v2617 = vpop.f32.mrb[0].mxu0
        %v2618 = vadd.f32 %v2457, %v2617
        %v2619 = vpop.f32.mrb[0].mxu0
        %2620 = vmatprep.mubr.bf16.mxu0 0
        %2621 = vmatmul.mubr.bf16.gmra.mrb[0].mxu0 %v1589
        %v2622 = vpop.f32.mrb[0].mxu0
        %v2623 = vadd.f32 %v2462, %v2622
        %v2624 = vpop.f32.mrb[0].mxu0
        %v2625 = vpop.f32.mrb[0].mxu0
        %v2626 = vadd.f32 %v2465, %v2625
        %v2627 = vpop.f32.mrb[0].mxu0
        %2628 = vmatprep.mubr.bf16.mxu0 0
        %2629 = vmatmul.mubr.bf16.gmra.mrb[0].mxu0 %v1592
        %v2630 = vpop.f32.mrb[0].mxu0
        %v2631 = vadd.f32 %v2470, %v2630
        %v2632 = vpop.f32.mrb[0].mxu0
        %v2633 = vpop.f32.mrb[0].mxu0
        %v2634 = vadd.f32 %v2473, %v2633
        %v2635 = vpop.f32.mrb[0].mxu0
        %2636 = vmatprep.mubr.bf16.mxu0 0
        %2637 = vmatmul.mubr.bf16.gmra.mrb[0].mxu0 %v2166
        %v2638 = vpop.f32.mrb[0].mxu0
        %v2639 = vadd.f32 %v2478, %v2638
        %v2640 = vpop.f32.mrb[0].mxu0
        %v2641 = vpop.f32.mrb[0].mxu0
        %v2642 = vadd.f32 %v2481, %v2641
        %v2643 = vpop.f32.mrb[0].mxu0
        %2644 = vdwg.mxu0
        %v2645 = vadd.f32 %v1981, %v2519
        %v2646 = vadd.f32 %v1984, %v2522
        %v2647 = vadd.f32 %v1989, %v2527
        %v2648 = vadd.f32 %v1992, %v2530
        %v2649 = vadd.f32 %v1997, %v2535
        %v2650 = vadd.f32 %v2000, %v2538
        %v2651 = vadd.f32 %v2005, %v2543
        %v2652 = vadd.f32 %v2008, %v2546
        %v2653 = vadd.f32 %v2013, %v2551
        %v2654 = vadd.f32 %v2016, %v2554
        %v2655 = vadd.f32 %v2021, %v2559
        %v2656 = vadd.f32 %v2024, %v2562
        %v2657 = vadd.f32 %v2029, %v2567
        %v2658 = vadd.f32 %v2032, %v2570
        %v2659 = vadd.f32 %v2037, %v2575
        %v2660 = vadd.f32 %v2040, %v2578
        %v2661 = vadd.f32 %v2045, %v2583
        %v2662 = vadd.f32 %v2048, %v2586
        %v2663 = vadd.f32 %v2053, %v2591
        %v2664 = vadd.f32 %v2056, %v2594
        %v2665 = vadd.f32 %v2061, %v2599
        %v2666 = vadd.f32 %v2064, %v2602
        %v2667 = vadd.f32 %v2069, %v2607
        %v2668 = vadd.f32 %v2072, %v2610
        %v2669 = vadd.f32 %v2077, %v2615
        %v2670 = vadd.f32 %v2080, %v2618
        %v2671 = vadd.f32 %v2085, %v2623
        %v2672 = vadd.f32 %v2088, %v2626
        %v2673 = vadd.f32 %v2093, %v2631
        %v2674 = vadd.f32 %v2096, %v2634
        %v2675 = vadd.f32 %v2101, %v2639
        %v2676 = vadd.f32 %v2104, %v2642
        %v2677 = vpack.c.bf16 %v2645, %v2645
        %v2678 = vpack.c.bf16 %v2646, %v2646
        %v2679 = vpack.c.bf16 %v2647, %v2647
        %v2680 = vpack.c.bf16 %v2648, %v2648
        %v2681 = vpack.c.bf16 %v2649, %v2649
        %v2682 = vpack.c.bf16 %v2650, %v2650
        %v2683 = vpack.c.bf16 %v2651, %v2651
        %v2684 = vpack.c.bf16 %v2652, %v2652
        %v2685 = vpack.c.bf16 %v2653, %v2653
        %v2686 = vpack.c.bf16 %v2654, %v2654
        %v2687 = vpack.c.bf16 %v2655, %v2655
        %v2688 = vpack.c.bf16 %v2656, %v2656
        %v2689 = vpack.c.bf16 %v2657, %v2657
        %v2690 = vpack.c.bf16 %v2658, %v2658
        %v2691 = vpack.c.bf16 %v2659, %v2659
        %v2692 = vpack.c.bf16 %v2660, %v2660
        %v2693 = vpack.c.bf16 %v2661, %v2661
        %v2694 = vpack.c.bf16 %v2662, %v2662
        %v2695 = vpack.c.bf16 %v2663, %v2663
        %v2696 = vpack.c.bf16 %v2664, %v2664
        %v2697 = vpack.c.bf16 %v2665, %v2665
        %v2698 = vpack.c.bf16 %v2666, %v2666
        %v2699 = vpack.c.bf16 %v2667, %v2667
        %v2700 = vpack.c.bf16 %v2668, %v2668
        %v2701 = vpack.c.bf16 %v2669, %v2669
        %v2702 = vpack.c.bf16 %v2670, %v2670
        %v2703 = vpack.c.bf16 %v2671, %v2671
        %v2704 = vpack.c.bf16 %v2672, %v2672
        %v2705 = vpack.c.bf16 %v2673, %v2673
        %v2706 = vpack.c.bf16 %v2674, %v2674
        %v2707 = vpack.c.bf16 %v2675, %v2675
        %v2708 = vpack.c.bf16 %v2676, %v2676
        %2709 = vst [vmem:[%s201] sm:$0xf] %v2677
        %2710 = vst [vmem:[%s201 + $0x4] sm:$0xf] %v2678
        %2711 = vst [vmem:[%s201 + $0x8] sm:$0xf] %v2679
        %2712 = vst [vmem:[%s201 + $0xc] sm:$0xf] %v2680
        %2713 = vst [vmem:[%s201 + $0x10] sm:$0xf] %v2681
        %2714 = vst [vmem:[%s201 + $0x14] sm:$0xf] %v2682
        %2715 = vst [vmem:[%s201 + $0x18] sm:$0xf] %v2683
        %2716 = vst [vmem:[%s201 + $0x1c] sm:$0xf] %v2684
        %2717 = vst [vmem:[%s201 + $0x20] sm:$0xf] %v2685
        %2718 = vst [vmem:[%s201 + $0x24] sm:$0xf] %v2686
        %2719 = vst [vmem:[%s201 + $0x28] sm:$0xf] %v2687
        %2720 = vst [vmem:[%s201 + $0x2c] sm:$0xf] %v2688
        %2721 = vst [vmem:[%s201 + $0x30] sm:$0xf] %v2689
        %2722 = vst [vmem:[%s201 + $0x34] sm:$0xf] %v2690
        %2723 = vst [vmem:[%s201 + $0x38] sm:$0xf] %v2691
        %2724 = vst [vmem:[%s201 + $0x3c] sm:$0xf] %v2692
        %2725 = vst [vmem:[%s201 + $0x40] sm:$0xf] %v2693
        %2726 = vst [vmem:[%s201 + $0x44] sm:$0xf] %v2694
        %2727 = vst [vmem:[%s201 + $0x48] sm:$0xf] %v2695
        %2728 = vst [vmem:[%s201 + $0x4c] sm:$0xf] %v2696
        %2729 = vst [vmem:[%s201 + $0x50] sm:$0xf] %v2697
        %2730 = vst [vmem:[%s201 + $0x54] sm:$0xf] %v2698
        %2731 = vst [vmem:[%s201 + $0x58] sm:$0xf] %v2699
        %2732 = vst [vmem:[%s201 + $0x5c] sm:$0xf] %v2700
        %2733 = vst [vmem:[%s201 + $0x60] sm:$0xf] %v2701
        %2734 = vst [vmem:[%s201 + $0x64] sm:$0xf] %v2702
        %2735 = vst [vmem:[%s201 + $0x68] sm:$0xf] %v2703
        %2736 = vst [vmem:[%s201 + $0x6c] sm:$0xf] %v2704
        %2737 = vst [vmem:[%s201 + $0x70] sm:$0xf] %v2705
        %2738 = vst [vmem:[%s201 + $0x74] sm:$0xf] %v2706
        %2739 = vst [vmem:[%s201 + $0x78] sm:$0xf] %v2707
        %2740 = vst [vmem:[%s201 + $0x7c] sm:$0xf] %v2708
        %p2741 = scmp.eq.s32.totalorder %s23, 0
        // Predicated region
        $region37: #{tpu_custom_call.1} parent=27 // pred_check
          %p2742 = pneg %p2741
        $region38: #{tpu_custom_call.1} parent=27 // pred_check_branch
          %2744 = sbr.rel (%p2742) target = $region40
        $region39: #{tpu_custom_call.1} parent=27 // pred_region
          %v2745 = vlaneseq
          %vm2746 = vcmp.ge.s32.totalorder %v2745, 0
          %vm2747 = vcmp.lt.s32.totalorder %v2745, 256
          %vm2748 = vmand %vm2746, %vm2747
          %2749 = vst.msk [vmem:[#allocation8] sm:$0x3] %vm2748, 0.0
        $region40: #{tpu_custom_call.1} parent=27 // pred_fallthru
          _
        %v2750 = vld [vmem:[#allocation8] sm:$0x3]
        %v2751 = vmul.f32 %v2645, %v2645
        %v2752 = vmul.f32 %v2646, %v2646
        %v2753 = vmul.f32 %v2647, %v2647
        %v2754 = vmul.f32 %v2648, %v2648
        %v2755 = vmul.f32 %v2649, %v2649
        %v2756 = vmul.f32 %v2650, %v2650
        %v2757 = vmul.f32 %v2651, %v2651
        %v2758 = vmul.f32 %v2652, %v2652
        %v2759 = vmul.f32 %v2653, %v2653
        %v2760 = vmul.f32 %v2654, %v2654
        %v2761 = vmul.f32 %v2655, %v2655
        %v2762 = vmul.f32 %v2656, %v2656
        %v2763 = vmul.f32 %v2657, %v2657
        %v2764 = vmul.f32 %v2658, %v2658
        %v2765 = vmul.f32 %v2659, %v2659
        %v2766 = vmul.f32 %v2660, %v2660
        %v2767 = vmul.f32 %v2661, %v2661
        %v2768 = vmul.f32 %v2662, %v2662
        %v2769 = vmul.f32 %v2663, %v2663
        %v2770 = vmul.f32 %v2664, %v2664
        %v2771 = vmul.f32 %v2665, %v2665
        %v2772 = vmul.f32 %v2666, %v2666
        %v2773 = vmul.f32 %v2667, %v2667
        %v2774 = vmul.f32 %v2668, %v2668
        %v2775 = vmul.f32 %v2669, %v2669
        %v2776 = vmul.f32 %v2670, %v2670
        %v2777 = vmul.f32 %v2671, %v2671
        %v2778 = vmul.f32 %v2672, %v2672
        %v2779 = vmul.f32 %v2673, %v2673
        %v2780 = vmul.f32 %v2674, %v2674
        %v2781 = vmul.f32 %v2675, %v2675
        %v2782 = vmul.f32 %v2676, %v2676
        %v2783 = vadd.f32 %v2645, %v2646
        %v2784 = vadd.f32 %v2783, %v2647
        %v2785 = vadd.f32 %v2784, %v2648
        %v2786 = vadd.f32 %v2785, %v2649
        %v2787 = vadd.f32 %v2786, %v2650
        %v2788 = vadd.f32 %v2787, %v2651
        %v2789 = vadd.f32 %v2788, %v2652
        %v2790 = vadd.f32 %v2789, %v2653
        %v2791 = vadd.f32 %v2790, %v2654
        %v2792 = vadd.f32 %v2791, %v2655
        %v2793 = vadd.f32 %v2792, %v2656
        %v2794 = vadd.f32 %v2793, %v2657
        %v2795 = vadd.f32 %v2794, %v2658
        %v2796 = vadd.f32 %v2795, %v2659
        %v2797 = vadd.f32 %v2796, %v2660
        %v2798 = vadd.f32 %v2797, %v2661
        %v2799 = vadd.f32 %v2798, %v2662
        %v2800 = vadd.f32 %v2799, %v2663
        %v2801 = vadd.f32 %v2800, %v2664
        %v2802 = vadd.f32 %v2801, %v2665
        %v2803 = vadd.f32 %v2802, %v2666
        %v2804 = vadd.f32 %v2803, %v2667
        %v2805 = vadd.f32 %v2804, %v2668
        %v2806 = vadd.f32 %v2805, %v2669
        %v2807 = vadd.f32 %v2806, %v2670
        %v2808 = vadd.f32 %v2807, %v2671
        %v2809 = vadd.f32 %v2808, %v2672
        %v2810 = vadd.f32 %v2809, %v2673
        %v2811 = vadd.f32 %v2810, %v2674
        %v2812 = vadd.f32 %v2811, %v2675
        %v2813 = vadd.f32 %v2812, %v2676
        %v2814 = vrot.slane %v2813, 4
        %v2815 = vadd.f32 %v2813, %v2814
        %v2816 = vrot.slane %v2815, 2
        %v2817 = vadd.f32 %v2815, %v2816
        %v2818 = vrot.slane %v2817, 1
        %v2819 = vadd.f32 %v2817, %v2818
        %v2820 = vadd.f32 %v2751, %v2752
        %v2821 = vadd.f32 %v2820, %v2753
        %v2822 = vadd.f32 %v2821, %v2754
        %v2823 = vadd.f32 %v2822, %v2755
        %v2824 = vadd.f32 %v2823, %v2756
        %v2825 = vadd.f32 %v2824, %v2757
        %v2826 = vadd.f32 %v2825, %v2758
        %v2827 = vadd.f32 %v2826, %v2759
        %v2828 = vadd.f32 %v2827, %v2760
        %v2829 = vadd.f32 %v2828, %v2761
        %v2830 = vadd.f32 %v2829, %v2762
        %v2831 = vadd.f32 %v2830, %v2763
        %v2832 = vadd.f32 %v2831, %v2764
        %v2833 = vadd.f32 %v2832, %v2765
        %v2834 = vadd.f32 %v2833, %v2766
        %v2835 = vadd.f32 %v2834, %v2767
        %v2836 = vadd.f32 %v2835, %v2768
        %v2837 = vadd.f32 %v2836, %v2769
        %v2838 = vadd.f32 %v2837, %v2770
        %v2839 = vadd.f32 %v2838, %v2771
        %v2840 = vadd.f32 %v2839, %v2772
        %v2841 = vadd.f32 %v2840, %v2773
        %v2842 = vadd.f32 %v2841, %v2774
        %v2843 = vadd.f32 %v2842, %v2775
        %v2844 = vadd.f32 %v2843, %v2776
        %v2845 = vadd.f32 %v2844, %v2777
        %v2846 = vadd.f32 %v2845, %v2778
        %v2847 = vadd.f32 %v2846, %v2779
        %v2848 = vadd.f32 %v2847, %v2780
        %v2849 = vadd.f32 %v2848, %v2781
        %v2850 = vadd.f32 %v2849, %v2782
        %v2851 = vrot.slane %v2850, 4
        %v2852 = vadd.f32 %v2850, %v2851
        %v2853 = vrot.slane %v2852, 2
        %v2854 = vadd.f32 %v2852, %v2853
        %v2855 = vrot.slane %v2854, 1
        %v2856 = vadd.f32 %v2854, %v2855
        %v2859 = vcombine.low %v2819, %v2856
        %v2861 = vunpack.c.l.s4 1966171168
        %v2862 = vunpack.c.0.s8 %v2861
        %v2863 = vlaneseq
        %v2864 = vshrl.u32 %v2863, 7
        %v2865 = vsub.s32 %v2862, %v2864
        %v2866 = vrot.slane %v2859, %v2865
        %v2868 = vunpack.c.l.s4 1966171168
        %v2869 = vunpack.c.0.s8 %v2868
        %v2870 = vlaneseq
        %v2871 = vshrl.u32 %v2870, 7
        %v2872 = vsub.s32 %v2869, %v2871
        %v2873 = vrot.slane %v2866, %v2872
        %v2875 = vadd.f32 %v2750, %v2873
        %v2876 = vlaneseq
        %vm2877 = vcmp.ge.s32.totalorder %v2876, 0
        %vm2878 = vcmp.lt.s32.totalorder %v2876, 256
        %vm2879 = vmand %vm2877, %vm2878
        %2880 = vst.msk [vmem:[#allocation8] sm:$0x3] %vm2879, %v2875
        %s2881 = sand.u32 %s78, 1
        %s2882 = scalar_lea.sflag [#allocation4], %s2881
        %s2883 = sand.u32 %s78, 1
        %s2884 = smul.addr %s2883, 128
        %s2885 = scalar_lea.vmem [#allocation7], %s2884
        // Predicated region
        $region41: #{tpu_custom_call.1} parent=27 // pred_check
          %p2886 = pneg %p88
        $region42: #{tpu_custom_call.1} parent=27 // pred_check_branch
          %2888 = sbr.rel (%p2886) target = $region44
        $region43: #{tpu_custom_call.1} parent=27 // pred_region
          %s2889 = smul.u32 4, %s23
          %s2891 = ssub.s32 2048, 2048
          %2892 = vsyncadd %s2882, %s2891
          %s2893 = smul.addr %s2889, 8
          %s2894 = smul.addr %s2893, 64
          %s2895 = scalar_lea.hbm %s2, %s2894
          %s2896 = sshll.u32 %s2885, 4
          %s2897 = int_to_ptr.vmem [resolvable:$true] %s2896
          %2902 = dma.vmem_to_hbm [thread:$0]  %s2897, 2048, %s2895, %s2882, 64, 64, 4
        $region44: #{tpu_custom_call.1} parent=27 // pred_fallthru
          _
        // Predicated region
        $region45: #{tpu_custom_call.1} parent=27 // pred_check
          %p2903 = pneg %p109
        $region46: #{tpu_custom_call.1} parent=27 // pred_check_branch
          %2905 = sbr.rel (%p2903) target = $region48
        $region47: #{tpu_custom_call.1} parent=27 // pred_region
          %s2907 = ssub.s32 32, 32
          %2908 = vsyncadd [#allocation9], %s2907
          %s2910 = sshll.u32 [#allocation8], 4
          %s2911 = int_to_ptr.vmem [resolvable:$true] %s2910
          %2913 = dma.vmem_to_hbm [thread:$0]  %s2911, 32, %s3, [#allocation9]
        $region48: #{tpu_custom_call.1} parent=27 // pred_fallthru
          _
        // Predicated region
        $region49: #{tpu_custom_call.1} parent=27 // pred_check
          %p2914 = pneg %p109
        $region50: #{tpu_custom_call.1} parent=27 // pred_check_branch
          %2916 = sbr.rel (%p2914) target = $region52
        $region51: #{tpu_custom_call.1} parent=27 // pred_region
          %2917 = dma.done [#allocation9], 32
        $region52: #{tpu_custom_call.1} parent=27 // pred_fallthru
          _
      $region28: #{tpu_custom_call.1} parent=5 // pred_fallthru
        _
      %p2918 = scmp.le.s32.totalorder 2, %s18
      // Predicated region
      $region53: #{tpu_custom_call.1} parent=5 // pred_check
        %p2919 = pneg %p2918
      $region54: #{tpu_custom_call.1} parent=5 // pred_check_branch
        %2921 = sbr.rel (%p2919) target = $region56
      $region55: #{tpu_custom_call.1} parent=5 // pred_region
        %s2922 = ssub.s32 %s18, 2
        // Predicated region
        $region57: #{tpu_custom_call.1} parent=55 // pred_check
          %p2923 = pneg %p94
        $region58: #{tpu_custom_call.1} parent=55 // pred_check_branch
          %2925 = sbr.rel (%p2923) target = $region60
        $region59: #{tpu_custom_call.1} parent=55 // pred_region
          %s2926 = sand.u32 %s79, 1
          %s2927 = scalar_lea.sflag [#allocation4], %s2926
          %s2928 = sand.u32 %s79, 1
          %s2929 = smul.addr %s2928, 128
          %s2930 = scalar_lea.vmem [#allocation7], %s2929
          %2931 = dma.done %s2927, 2048
        $region60: #{tpu_custom_call.1} parent=55 // pred_fallthru
          _
      $region56: #{tpu_custom_call.1} parent=5 // pred_fallthru
        _
    $region6: #{tpu_custom_call.1} parent=1 // loop_footer
      %s22 = sadd.s32 1, %s18
    $region7: #{tpu_custom_call.1} parent=1 // loop_footer_branch
      %17 = sbr.rel target = $region3
    $region8: #{tpu_custom_call.1} parent=1 // loop_exit
      _
    %2932 = vsyncpa [#allocation3], 1
    %s2933 = scalar_lea.sflag [#allocation3], 1
    %2934 = vsyncpa %s2933, 1
    %2935 = vsyncpa [#allocation6], 1
    %2936 = vsyncpa [#allocation4], 1
    %s2937 = scalar_lea.sflag [#allocation4], 1
    %2938 = vsyncpa %s2937, 1
    %2939 = vsyncpa [#allocation9], 1

</llo_original>
